<compile_context>
chip_gen: v6e
topology: v6e:2x2x1
jax: 0.10.0
libtpu: 0.0.40
codegen_flags: <defaults>
</compile_context>

<pallas_src>
import functools
import math

import jax
import jax.numpy as jnp
import numpy as np
from jax.experimental import pallas as pl
from jax.experimental.pallas import tpu as pltpu


def _mha_kernel(x_ref, bias_ref, wqkv_ref, bqkv_ref, wp_ref, bp_ref, o_ref, *,
                num_heads: int, exact_softmax: bool):
    """One grid step = one block of batch elements flattened along rows.

    x_ref    : [rows, E]     input rows (rows = block_batch * S)
    bias_ref : [rows, rows]  additive block-diagonal causal bias (0 / -1e30), f32
    wqkv_ref : [E, 3E]       fused [Wq*scale | Wk | Wv]   (compute dtype)
    bqkv_ref : [1, 3E]       fused [bq*scale | bk | bv]   (f32)
    wp_ref   : [E, E]        output projection weight     (compute dtype)
    bp_ref   : [1, E]        output projection bias       (f32)
    o_ref    : [rows, E]
    """
    rows, E = x_ref.shape
    H = num_heads
    Hd = E // H
    cdt = wqkv_ref.dtype                      # MXU operand dtype (bf16 or f32)

    # Fused Q/K/V projection: one wide MXU pass, f32 accumulation.
    x = x_ref[...].astype(cdt)
    qkv = jnp.dot(x, wqkv_ref[...], preferred_element_type=jnp.float32)
    qkv = (qkv + bqkv_ref[...]).astype(cdt)   # [rows, 3E]

    # One relayout to head-major [H, rows, Hd]; afterwards the scores and P@V
    # are single head-batched dot_generals (no per-head python loop of tiny
    # GEMMs, no per-head slices feeding separate vmatmul sequences).
    def head_major(base):
        return jnp.stack(
            [qkv[:, base + h * Hd: base + (h + 1) * Hd] for h in range(H)],
            axis=0)

    q = head_major(0)          # [H, rows, Hd]  (softmax scale pre-folded into Wq)
    k = head_major(E)
    v = head_major(2 * E)

    # Scores + additive causal bias (mask hoisted to the wrapper), f32.
    s = jnp.einsum('hqd,hkd->hqk', q, k,
                   preferred_element_type=jnp.float32)    # [H, rows, rows]
    s = s + bias_ref[...]

    # Numerically stable softmax with DEFERRED normalization: normalize hv
    # ([H, rows, Hd]) after the P@V matmul instead of p ([H, rows, rows]).
    m = jnp.max(s, axis=-1, keepdims=True)
    p = jnp.exp(s - m)                                     # unnormalized probs
    l = jnp.sum(p, axis=-1, keepdims=True)                 # [H, rows, 1]

    hv = jnp.einsum('hqk,hkd->hqd', p.astype(cdt), v,
                    preferred_element_type=jnp.float32)    # [H, rows, Hd]
    if exact_softmax:
        hv = hv / l                                        # exact (f32 path)
    else:
        hv = hv * pl.reciprocal(l, approx=True)            # EUP slot, ~free

    # Concatenate heads back to [rows, E] (head h -> columns h*Hd:(h+1)*Hd,
    # matching torch.cat([head(x) ...], dim=-1)) and do ONE K=E projection GEMM.
    heads_cat = jnp.concatenate([hv[h] for h in range(H)], axis=-1)
    out = jnp.dot(heads_cat.astype(cdt), wp_ref[...],
                  preferred_element_type=jnp.float32) + bp_ref[...]
    o_ref[...] = out.astype(o_ref.dtype)


def _row_target_and_cores():
    """Per-generation row-block target (MXU M occupancy) and TensorCores/chip."""
    try:
        kind = (jax.devices()[0].device_kind or "").lower()
    except Exception:
        kind = ""
    if "v7" in kind or "7x" in kind:
        return 256, 2          # 2x256 MXU, 2 TensorCores per chip
    if "v6" in kind:
        return 256, 1          # 2x256 MXU, 1 TensorCore
    # v5e (4x128x128 MXU) and unknown/older chips: 128 rows already fill M.
    return 128, 1


def multi_head_attention(x, wq, bq, wk, bk, wv, bv, wp, bp, *,
                         num_heads: int, block_batch: int | None = None,
                         compute_dtype=jnp.bfloat16,
                         single_buffer_weights: bool = True):
    """x: [B, S, E].  Weights use the y = x @ W + b convention (each W is the
    transpose of the matching torch nn.Linear.weight); per-head Q/K/V weights
    are stacked along columns so head h occupies columns [h*Hd, (h+1)*Hd)."""
    B, S, E = x.shape
    if E % num_heads != 0:
        raise ValueError("embedding size must be divisible by num_heads")
    for name, w in (("wq", wq), ("wk", wk), ("wv", wv), ("wp", wp)):
        if w.shape != (E, E):
            raise ValueError(f"{name} must have shape {(E, E)}, got {w.shape}")
    Hd = E // num_heads
    scale = Hd ** (-0.5)

    # Fuse Q/K/V into a single [E, 3E] weight; fold the softmax scale into Q.
    wqkv = jnp.concatenate([wq * scale, wk, wv], axis=-1).astype(compute_dtype)
    bqkv = jnp.concatenate([bq * scale, bk, bv], axis=-1).astype(jnp.float32)
    wp_c = wp.astype(compute_dtype)
    bp_f = bp.astype(jnp.float32)

    # ---- batch packing heuristic (per chip generation) ----------------------
    row_target, num_cores = _row_target_and_cores()
    if block_batch is None:
        if S >= 64:
            # Packing costs (Bt*S)^2 score FLOPs for only Bt*S^2 useful work;
            # only worth it while S is far below the MXU M dimension.
            block_batch = 1
        else:
            block_batch = min(B, max(1, row_target // S))
        if num_cores > 1:
            # v7x: keep the "parallel" grid axis >= number of TensorCores.
            block_batch = min(block_batch, max(1, B // min(num_cores, B)))
    block_batch = max(1, min(int(block_batch), B))
    while B % block_batch != 0:
        block_batch -= 1
    if (block_batch * S) % 8 != 0 and block_batch != B:
        block_batch = B                     # keep the row block (8,128)-legal
    rows = block_batch * S
    nblocks = B // block_batch

    # Block-diagonal causal additive bias (0 keep / -1e30 drop), built once at
    # trace time: no iota / compare / int-divide work inside the kernel.
    # NOTE: every row keeps its diagonal, so the finite -1e30 can never yield a
    # fully-masked (garbage-softmax) row; revisit if padding masks are added.
    r = np.arange(rows)
    keep = (r[:, None] >= r[None, :]) & ((r[:, None] // S) == (r[None, :] // S))
    bias = jnp.asarray(np.where(keep, 0.0, -1e30), dtype=jnp.float32)

    x_flat = x.reshape(B * S, E)
    kernel = functools.partial(
        _mha_kernel, num_heads=num_heads,
        exact_softmax=(np.dtype(compute_dtype) == np.dtype(np.float32)))

    # Advisory cost estimate so XLA schedules surrounding ops sensibly.
    flops = int(2 * B * S * E * 3 * E                     # fused QKV projection
                + 2 * 2 * nblocks * rows * rows * E       # scores + P@V
                + 2 * B * S * E * E)                      # output projection
    transc = int(nblocks * num_heads * rows * rows)       # exp
    bytes_acc = int((x_flat.size + B * S * E) * x.dtype.itemsize
                    + (wqkv.size + wp_c.size) * wqkv.dtype.itemsize
                    + (bqkv.size + bp_f.size + bias.size) * 4)
    cost = pl.CostEstimate(flops=flops, transcendentals=transc,
                           bytes_accessed=bytes_acc)

    # Explicit VMEM budget (v7x has 64 MiB physical vs 128 on v5e/v6e):
    # single-buffered weights + double-buffered x/out blocks + live score state
    # must fit; clamp to a safe [32, 48] MiB window.
    weight_bytes = ((wqkv.size + wp_c.size) * wqkv.dtype.itemsize
                    + (bqkv.size + bp_f.size) * 4)
    live_bytes = (bias.size * 4 + 4 * rows * E * x.dtype.itemsize
                  + (num_heads + 2) * rows * rows * 4 + 8 * rows * E * 4)
    vmem_limit = int(min(max(2 * (2 * weight_bytes + live_bytes), 32 << 20),
                         48 << 20))

    def build(weight_pipeline_mode):
        extra = ({} if weight_pipeline_mode is None
                 else {"pipeline_mode": weight_pipeline_mode})
        in_specs = [
            pl.BlockSpec((rows, E), lambda b: (b, 0)),               # x rows
            pl.BlockSpec((rows, rows), lambda b: (0, 0), **extra),   # causal bias
            pl.BlockSpec((E, 3 * E), lambda b: (0, 0), **extra),     # fused QKV w
            pl.BlockSpec((1, 3 * E), lambda b: (0, 0), **extra),     # fused QKV b
            pl.BlockSpec((E, E), lambda b: (0, 0), **extra),         # projection w
            pl.BlockSpec((1, E), lambda b: (0, 0), **extra),         # projection b
        ]
        return pl.pallas_call(
            kernel,
            out_shape=jax.ShapeDtypeStruct((B * S, E), x.dtype),
            grid_spec=pltpu.PrefetchScalarGridSpec(
                num_scalar_prefetch=0,
                grid=(nblocks,),
                in_specs=in_specs,
                out_specs=pl.BlockSpec((rows, E), lambda b: (b, 0)),
            ),
            compiler_params=pltpu.CompilerParams(
                dimension_semantics=("parallel",),
                vmem_limit_bytes=vmem_limit),
            cost_estimate=cost,
        )

    args = (x_flat, bias, wqkv, bqkv, wp_c, bp_f)
    out_flat = None
    if single_buffer_weights:
        try:
            # Constant-index weights don't need double buffering; on v7x this
            # halves resident weight VMEM.  Falls back if this JAX build does
            # not accept pipeline_mode / Buffered(1).
            out_flat = build(pl.Buffered(1))(*args)
        except Exception:
            out_flat = None
    if out_flat is None:
        out_flat = build(None)(*args)

    # TODO(synk): attention/output dropout is identity (eval-mode forward only).
    # TODO(synk): for S >= ~256, replace the dense [rows, rows] score path with
    # a KV-tiled online-softmax (flash) grid axis so live score state stays in
    # a handful of vregs instead of going spill-bound.
    # TODO(synk): at toy E=32 the (last-dim < 128) blocks are lane-bound; at
    # production E (multiples of 128) all blocks are already lane-dense.
    return out_flat.reshape(B, S, E)


def reference_mha(x, wq, bq, wk, bk, wv, bv, wp, bp, *, num_heads: int):
    """Pure-JAX f32 reference matching the PyTorch forward (eval mode)."""
    B, S, E = x.shape
    Hd = E // num_heads
    q = x @ wq + bq[0]
    k = x @ wk + bk[0]
    v = x @ wv + bv[0]
    qh = q.reshape(B, S, num_heads, Hd).transpose(0, 2, 1, 3)
    kh = k.reshape(B, S, num_heads, Hd).transpose(0, 2, 1, 3)
    vh = v.reshape(B, S, num_heads, Hd).transpose(0, 2, 1, 3)
    att = jnp.einsum("bhsd,bhtd->bhst", qh, kh) * Hd ** (-0.5)
    mask = jnp.tril(jnp.ones((S, S), bool))
    att = jnp.where(mask, att, -jnp.inf)
    att = jax.nn.softmax(att, axis=-1)
    out = jnp.einsum("bhst,bhtd->bhsd", att, vh)
    out = out.transpose(0, 2, 1, 3).reshape(B, S, E)   # concat heads
    return out @ wp + bp[0]


if __name__ == "__main__":
    # Config consistent with the module: embedding_size=32, num_heads=4
    # (head_size=8); batch=2, sequence length=8.
    B, S, E, NUM_HEADS = 2, 8, 32, 4

    key = jax.random.PRNGKey(0)
    ks = jax.random.split(key, 9)
    scale = 1.0 / math.sqrt(E)

    x = jax.random.normal(ks[0], (B, S, E), jnp.float32)

    # Stacked per-head Q/K/V weights in y = x @ W + b form:
    # W[:, h*Hd:(h+1)*Hd] is head h's nn.Linear(E, Hd).weight transposed.
    wq = jax.random.uniform(ks[1], (E, E), jnp.float32, -scale, scale)
    bq = jax.random.uniform(ks[2], (1, E), jnp.float32, -scale, scale)
    wk = jax.random.uniform(ks[3], (E, E), jnp.float32, -scale, scale)
    bk = jax.random.uniform(ks[4], (1, E), jnp.float32, -scale, scale)
    wv = jax.random.uniform(ks[5], (E, E), jnp.float32, -scale, scale)
    bv = jax.random.uniform(ks[6], (1, E), jnp.float32, -scale, scale)
    wp = jax.random.uniform(ks[7], (E, E), jnp.float32, -scale, scale)
    bp = jax.random.uniform(ks[8], (1, E), jnp.float32, -scale, scale)

    ref = reference_mha(x, wq, bq, wk, bk, wv, bv, wp, bp, num_heads=NUM_HEADS)

    # f32 MXU operands + exact softmax division: tight check vs the reference.
    out_f32 = multi_head_attention(x, wq, bq, wk, bk, wv, bv, wp, bp,
                                   num_heads=NUM_HEADS,
                                   compute_dtype=jnp.float32)
    out_f32 = jax.block_until_ready(out_f32)
    assert out_f32.shape == (B, S, E)
    err32 = float(jnp.max(jnp.abs(out_f32 - ref)))
    assert jnp.allclose(out_f32, ref, atol=5e-3, rtol=5e-3), f"f32 mismatch: {err32}"

    # Default bf16 MXU operands (f32 accumulation / f32 softmax): loose check.
    out_bf16 = multi_head_attention(x, wq, bq, wk, bk, wv, bv, wp, bp,
                                    num_heads=NUM_HEADS)
    out_bf16 = jax.block_until_ready(out_bf16)
    assert out_bf16.shape == (B, S, E)
    err16 = float(jnp.max(jnp.abs(out_bf16 - ref)))
    assert jnp.allclose(out_bf16, ref, atol=7.5e-2, rtol=5e-2), f"bf16 mismatch: {err16}"

    print("KERNEL_OK")
</pallas_src>

<mosaic_0001>
module attributes {stable_mosaic.version = 11 : i64} {
  func.func @_mha_kernel(%arg0: i32, %arg1: memref<16x32xf32, #tpu.memory_space<vmem>>, %arg2: memref<16x16xf32, #tpu.memory_space<vmem>>, %arg3: memref<32x96xf32, #tpu.memory_space<vmem>>, %arg4: memref<1x96xf32, #tpu.memory_space<vmem>>, %arg5: memref<32x32xf32, #tpu.memory_space<vmem>>, %arg6: memref<1x32xf32, #tpu.memory_space<vmem>>, %arg7: memref<16x32xf32, #tpu.memory_space<vmem>>) attributes {dimension_semantics = [#tpu.dimension_semantics<parallel>], iteration_bounds = array<i64: 1>, scalar_prefetch = 0 : i64, scratch_operands = 0 : i64, tpu.core_type = #tpu.core_type<tc>, window_params = [{transform_indices = @transform_0, window_bounds = array<i64: 16, 32>}, {pipeline_mode = #tpu.pipeline_mode<synchronous>, transform_indices = @transform_1, window_bounds = array<i64: 16, 16>}, {pipeline_mode = #tpu.pipeline_mode<synchronous>, transform_indices = @transform_2, window_bounds = array<i64: 32, 96>}, {pipeline_mode = #tpu.pipeline_mode<synchronous>, transform_indices = @transform_3, window_bounds = array<i64: 1, 96>}, {pipeline_mode = #tpu.pipeline_mode<synchronous>, transform_indices = @transform_4, window_bounds = array<i64: 32, 32>}, {pipeline_mode = #tpu.pipeline_mode<synchronous>, transform_indices = @transform_5, window_bounds = array<i64: 1, 32>}, {transform_indices = @transform_6, window_bounds = array<i64: 16, 32>}]} {
    %c0 = arith.constant 0 : index
    %c0_0 = arith.constant 0 : index
    %0 = vector.load %arg1[%c0, %c0_0] : memref<16x32xf32, #tpu.memory_space<vmem>>, vector<16x32xf32>
    %c0_1 = arith.constant 0 : index
    %c0_2 = arith.constant 0 : index
    %1 = vector.load %arg3[%c0_1, %c0_2] : memref<32x96xf32, #tpu.memory_space<vmem>>, vector<32x96xf32>
    %cst = arith.constant dense<0.000000e+00> : vector<16x96xf32>
    %2 = tpu.matmul %0, %1, %cst {dimension_numbers = #tpu.dot_dimension_numbers<[1], [0], [0], [1], [0, 0, 1, 1], [], []>} : vector<16x32xf32>, vector<32x96xf32>, vector<16x96xf32> -> vector<16x96xf32>
    %c0_3 = arith.constant 0 : index
    %c0_4 = arith.constant 0 : index
    %3 = vector.load %arg4[%c0_3, %c0_4] : memref<1x96xf32, #tpu.memory_space<vmem>>, vector<1x96xf32>
    %4 = vector.broadcast %3 : vector<1x96xf32> to vector<16x96xf32>
    %5 = arith.addf %2, %4 : vector<16x96xf32>
    %6 = vector.extract_strided_slice %5 {offsets = [0, 0], sizes = [16, 8], strides = [1, 1]} : vector<16x96xf32> to vector<16x8xf32>
    %7 = vector.extract_strided_slice %5 {offsets = [0, 8], sizes = [16, 8], strides = [1, 1]} : vector<16x96xf32> to vector<16x8xf32>
    %8 = vector.extract_strided_slice %5 {offsets = [0, 16], sizes = [16, 8], strides = [1, 1]} : vector<16x96xf32> to vector<16x8xf32>
    %9 = vector.extract_strided_slice %5 {offsets = [0, 24], sizes = [16, 8], strides = [1, 1]} : vector<16x96xf32> to vector<16x8xf32>
    %10 = vector.shape_cast %6 : vector<16x8xf32> to vector<1x16x8xf32>
    %11 = vector.shape_cast %7 : vector<16x8xf32> to vector<1x16x8xf32>
    %12 = vector.shape_cast %8 : vector<16x8xf32> to vector<1x16x8xf32>
    %13 = vector.shape_cast %9 : vector<16x8xf32> to vector<1x16x8xf32>
    %14 = tpu.concatenate %10, %11, %12, %13 in 0 : vector<1x16x8xf32>, vector<1x16x8xf32>, vector<1x16x8xf32>, vector<1x16x8xf32> -> vector<4x16x8xf32>
    %15 = vector.extract_strided_slice %5 {offsets = [0, 32], sizes = [16, 8], strides = [1, 1]} : vector<16x96xf32> to vector<16x8xf32>
    %16 = vector.extract_strided_slice %5 {offsets = [0, 40], sizes = [16, 8], strides = [1, 1]} : vector<16x96xf32> to vector<16x8xf32>
    %17 = vector.extract_strided_slice %5 {offsets = [0, 48], sizes = [16, 8], strides = [1, 1]} : vector<16x96xf32> to vector<16x8xf32>
    %18 = vector.extract_strided_slice %5 {offsets = [0, 56], sizes = [16, 8], strides = [1, 1]} : vector<16x96xf32> to vector<16x8xf32>
    %19 = vector.shape_cast %15 : vector<16x8xf32> to vector<1x16x8xf32>
    %20 = vector.shape_cast %16 : vector<16x8xf32> to vector<1x16x8xf32>
    %21 = vector.shape_cast %17 : vector<16x8xf32> to vector<1x16x8xf32>
    %22 = vector.shape_cast %18 : vector<16x8xf32> to vector<1x16x8xf32>
    %23 = tpu.concatenate %19, %20, %21, %22 in 0 : vector<1x16x8xf32>, vector<1x16x8xf32>, vector<1x16x8xf32>, vector<1x16x8xf32> -> vector<4x16x8xf32>
    %24 = vector.extract_strided_slice %5 {offsets = [0, 64], sizes = [16, 8], strides = [1, 1]} : vector<16x96xf32> to vector<16x8xf32>
    %25 = vector.extract_strided_slice %5 {offsets = [0, 72], sizes = [16, 8], strides = [1, 1]} : vector<16x96xf32> to vector<16x8xf32>
    %26 = vector.extract_strided_slice %5 {offsets = [0, 80], sizes = [16, 8], strides = [1, 1]} : vector<16x96xf32> to vector<16x8xf32>
    %27 = vector.extract_strided_slice %5 {offsets = [0, 88], sizes = [16, 8], strides = [1, 1]} : vector<16x96xf32> to vector<16x8xf32>
    %28 = vector.shape_cast %24 : vector<16x8xf32> to vector<1x16x8xf32>
    %29 = vector.shape_cast %25 : vector<16x8xf32> to vector<1x16x8xf32>
    %30 = vector.shape_cast %26 : vector<16x8xf32> to vector<1x16x8xf32>
    %31 = vector.shape_cast %27 : vector<16x8xf32> to vector<1x16x8xf32>
    %32 = tpu.concatenate %28, %29, %30, %31 in 0 : vector<1x16x8xf32>, vector<1x16x8xf32>, vector<1x16x8xf32>, vector<1x16x8xf32> -> vector<4x16x8xf32>
    "tpu.trace_start"() <{level = 10 : i32, message = "hqd,hkd->hqk"}> : () -> ()
    %cst_5 = arith.constant dense<0.000000e+00> : vector<4x16x16xf32>
    %33 = tpu.matmul %14, %23, %cst_5 {dimension_numbers = #tpu.dot_dimension_numbers<[2], [2], [1], [1], [0, 0, 0, 1, 1, 1], [0], [0]>} : vector<4x16x8xf32>, vector<4x16x8xf32>, vector<4x16x16xf32> -> vector<4x16x16xf32>
    "tpu.trace_stop"() : () -> ()
    %c0_6 = arith.constant 0 : index
    %c0_7 = arith.constant 0 : index
    %34 = vector.load %arg2[%c0_6, %c0_7] : memref<16x16xf32, #tpu.memory_space<vmem>>, vector<16x16xf32>
    %35 = vector.shape_cast %34 : vector<16x16xf32> to vector<1x16x16xf32>
    %36 = vector.broadcast %35 : vector<1x16x16xf32> to vector<4x16x16xf32>
    %37 = arith.addf %33, %36 : vector<4x16x16xf32>
    %cst_8 = arith.constant dense<0xFF800000> : vector<4x16xf32>
    %38 = vector.multi_reduction <maximumf>, %37, %cst_8 [2] : vector<4x16x16xf32> to vector<4x16xf32>
    %39 = vector.shape_cast %38 : vector<4x16xf32> to vector<4x16x1xf32>
    %40 = vector.broadcast %39 : vector<4x16x1xf32> to vector<4x16x16xf32>
    %41 = arith.subf %37, %40 : vector<4x16x16xf32>
    %42 = math.exp %41 : vector<4x16x16xf32>
    %cst_9 = arith.constant dense<0.000000e+00> : vector<4x16xf32>
    %43 = vector.multi_reduction <add>, %42, %cst_9 [2] : vector<4x16x16xf32> to vector<4x16xf32>
    %44 = vector.shape_cast %43 : vector<4x16xf32> to vector<4x16x1xf32>
    "tpu.trace_start"() <{level = 10 : i32, message = "hqk,hkd->hqd"}> : () -> ()
    %cst_10 = arith.constant dense<0.000000e+00> : vector<4x16x8xf32>
    %45 = tpu.matmul %42, %32, %cst_10 {dimension_numbers = #tpu.dot_dimension_numbers<[2], [1], [1], [2], [0, 0, 0, 1, 1, 2], [0], [0]>} : vector<4x16x16xf32>, vector<4x16x8xf32>, vector<4x16x8xf32> -> vector<4x16x8xf32>
    "tpu.trace_stop"() : () -> ()
    %46 = vector.broadcast %44 : vector<4x16x1xf32> to vector<4x16x8xf32>
    %47 = arith.divf %45, %46 : vector<4x16x8xf32>
    %48 = vector.extract_strided_slice %47 {offsets = [0, 0, 0], sizes = [1, 16, 8], strides = [1, 1, 1]} : vector<4x16x8xf32> to vector<1x16x8xf32>
    %49 = vector.shape_cast %48 : vector<1x16x8xf32> to vector<16x8xf32>
    %50 = vector.extract_strided_slice %47 {offsets = [1, 0, 0], sizes = [1, 16, 8], strides = [1, 1, 1]} : vector<4x16x8xf32> to vector<1x16x8xf32>
    %51 = vector.shape_cast %50 : vector<1x16x8xf32> to vector<16x8xf32>
    %52 = vector.extract_strided_slice %47 {offsets = [2, 0, 0], sizes = [1, 16, 8], strides = [1, 1, 1]} : vector<4x16x8xf32> to vector<1x16x8xf32>
    %53 = vector.shape_cast %52 : vector<1x16x8xf32> to vector<16x8xf32>
    %54 = vector.extract_strided_slice %47 {offsets = [3, 0, 0], sizes = [1, 16, 8], strides = [1, 1, 1]} : vector<4x16x8xf32> to vector<1x16x8xf32>
    %55 = vector.shape_cast %54 : vector<1x16x8xf32> to vector<16x8xf32>
    %56 = tpu.concatenate %49, %51, %53, %55 in 1 : vector<16x8xf32>, vector<16x8xf32>, vector<16x8xf32>, vector<16x8xf32> -> vector<16x32xf32>
    %c0_11 = arith.constant 0 : index
    %c0_12 = arith.constant 0 : index
    %57 = vector.load %arg5[%c0_11, %c0_12] : memref<32x32xf32, #tpu.memory_space<vmem>>, vector<32x32xf32>
    %cst_13 = arith.constant dense<0.000000e+00> : vector<16x32xf32>
    %58 = tpu.matmul %56, %57, %cst_13 {dimension_numbers = #tpu.dot_dimension_numbers<[1], [0], [0], [1], [0, 0, 1, 1], [], []>} : vector<16x32xf32>, vector<32x32xf32>, vector<16x32xf32> -> vector<16x32xf32>
    %c0_14 = arith.constant 0 : index
    %c0_15 = arith.constant 0 : index
    %59 = vector.load %arg6[%c0_14, %c0_15] : memref<1x32xf32, #tpu.memory_space<vmem>>, vector<1x32xf32>
    %60 = vector.broadcast %59 : vector<1x32xf32> to vector<16x32xf32>
    %61 = arith.addf %58, %60 : vector<16x32xf32>
    %c0_16 = arith.constant 0 : index
    %c0_17 = arith.constant 0 : index
    %62 = vector.load %arg7[%c0_16, %c0_17] : memref<16x32xf32, #tpu.memory_space<vmem>>, vector<16x32xf32>
    tpu.vector_store %arg7[%c0_16, %c0_17], %61 {strides = array<i32>} : memref<16x32xf32, #tpu.memory_space<vmem>>, vector<16x32xf32>,
    return
  }
  func.func @transform_0(%arg0: i32) -> (i32, i32) {
    %c0_i32 = arith.constant 0 : i32
    %c0_i32_0 = arith.constant 0 : i32
    return %arg0, %c0_i32 : i32, i32
  }
  func.func @transform_1(%arg0: i32) -> (i32, i32) {
    %c0_i32 = arith.constant 0 : i32
    %c0_i32_0 = arith.constant 0 : i32
    %c0_i32_1 = arith.constant 0 : i32
    return %c0_i32, %c0_i32_0 : i32, i32
  }
  func.func @transform_2(%arg0: i32) -> (i32, i32) {
    %c0_i32 = arith.constant 0 : i32
    %c0_i32_0 = arith.constant 0 : i32
    %c0_i32_1 = arith.constant 0 : i32
    return %c0_i32, %c0_i32_0 : i32, i32
  }
  func.func @transform_3(%arg0: i32) -> (i32, i32) {
    %c0_i32 = arith.constant 0 : i32
    %c0_i32_0 = arith.constant 0 : i32
    %c0_i32_1 = arith.constant 0 : i32
    return %c0_i32, %c0_i32_0 : i32, i32
  }
  func.func @transform_4(%arg0: i32) -> (i32, i32) {
    %c0_i32 = arith.constant 0 : i32
    %c0_i32_0 = arith.constant 0 : i32
    %c0_i32_1 = arith.constant 0 : i32
    return %c0_i32, %c0_i32_0 : i32, i32
  }
  func.func @transform_5(%arg0: i32) -> (i32, i32) {
    %c0_i32 = arith.constant 0 : i32
    %c0_i32_0 = arith.constant 0 : i32
    %c0_i32_1 = arith.constant 0 : i32
    return %c0_i32, %c0_i32_0 : i32, i32
  }
  func.func @transform_6(%arg0: i32) -> (i32, i32) {
    %c0_i32 = arith.constant 0 : i32
    %c0_i32_0 = arith.constant 0 : i32
    return %arg0, %c0_i32 : i32, i32
  }
}

module attributes {stable_mosaic.version = 11 : i64} {
  func.func @_mha_kernel(%arg0: i32, %arg1: memref<16x32xf32, #tpu.memory_space<vmem>>, %arg2: memref<16x16xf32, #tpu.memory_space<vmem>>, %arg3: memref<32x96xf32, #tpu.memory_space<vmem>>, %arg4: memref<1x96xf32, #tpu.memory_space<vmem>>, %arg5: memref<32x32xf32, #tpu.memory_space<vmem>>, %arg6: memref<1x32xf32, #tpu.memory_space<vmem>>, %arg7: memref<16x32xf32, #tpu.memory_space<vmem>>) attributes {dimension_semantics = [#tpu.dimension_semantics<parallel>], iteration_bounds = array<i64: 1>, scalar_prefetch = 0 : i64, scratch_operands = 0 : i64, tpu.core_type = #tpu.core_type<tc>, window_params = [{transform_indices = @transform_0, window_bounds = array<i64: 16, 32>}, {pipeline_mode = #tpu.pipeline_mode<synchronous>, transform_indices = @transform_1, window_bounds = array<i64: 16, 16>}, {pipeline_mode = #tpu.pipeline_mode<synchronous>, transform_indices = @transform_2, window_bounds = array<i64: 32, 96>}, {pipeline_mode = #tpu.pipeline_mode<synchronous>, transform_indices = @transform_3, window_bounds = array<i64: 1, 96>}, {pipeline_mode = #tpu.pipeline_mode<synchronous>, transform_indices = @transform_4, window_bounds = array<i64: 32, 32>}, {pipeline_mode = #tpu.pipeline_mode<synchronous>, transform_indices = @transform_5, window_bounds = array<i64: 1, 32>}, {transform_indices = @transform_6, window_bounds = array<i64: 16, 32>}]} {
    %c0 = arith.constant 0 : index
    %c0_0 = arith.constant 0 : index
    %0 = vector.load %arg1[%c0, %c0_0] : memref<16x32xf32, #tpu.memory_space<vmem>>, vector<16x32xf32>
    %c0_1 = arith.constant 0 : index
    %c0_2 = arith.constant 0 : index
    %1 = vector.load %arg3[%c0_1, %c0_2] : memref<32x96xf32, #tpu.memory_space<vmem>>, vector<32x96xf32>
    %cst = arith.constant dense<0.000000e+00> : vector<16x96xf32>
    %2 = tpu.matmul %0, %1, %cst {dimension_numbers = #tpu.dot_dimension_numbers<[1], [0], [0], [1], [0, 0, 1, 1], [], []>} : vector<16x32xf32>, vector<32x96xf32>, vector<16x96xf32> -> vector<16x96xf32>
    %c0_3 = arith.constant 0 : index
    %c0_4 = arith.constant 0 : index
    %3 = vector.load %arg4[%c0_3, %c0_4] : memref<1x96xf32, #tpu.memory_space<vmem>>, vector<1x96xf32>
    %4 = vector.broadcast %3 : vector<1x96xf32> to vector<16x96xf32>
    %5 = arith.addf %2, %4 : vector<16x96xf32>
    %6 = vector.extract_strided_slice %5 {offsets = [0, 0], sizes = [16, 8], strides = [1, 1]} : vector<16x96xf32> to vector<16x8xf32>
    %7 = vector.extract_strided_slice %5 {offsets = [0, 8], sizes = [16, 8], strides = [1, 1]} : vector<16x96xf32> to vector<16x8xf32>
    %8 = vector.extract_strided_slice %5 {offsets = [0, 16], sizes = [16, 8], strides = [1, 1]} : vector<16x96xf32> to vector<16x8xf32>
    %9 = vector.extract_strided_slice %5 {offsets = [0, 24], sizes = [16, 8], strides = [1, 1]} : vector<16x96xf32> to vector<16x8xf32>
    %10 = vector.shape_cast %6 : vector<16x8xf32> to vector<1x16x8xf32>
    %11 = vector.shape_cast %7 : vector<16x8xf32> to vector<1x16x8xf32>
    %12 = vector.shape_cast %8 : vector<16x8xf32> to vector<1x16x8xf32>
    %13 = vector.shape_cast %9 : vector<16x8xf32> to vector<1x16x8xf32>
    %14 = tpu.concatenate %10, %11, %12, %13 in 0 : vector<1x16x8xf32>, vector<1x16x8xf32>, vector<1x16x8xf32>, vector<1x16x8xf32> -> vector<4x16x8xf32>
    %15 = vector.extract_strided_slice %5 {offsets = [0, 32], sizes = [16, 8], strides = [1, 1]} : vector<16x96xf32> to vector<16x8xf32>
    %16 = vector.extract_strided_slice %5 {offsets = [0, 40], sizes = [16, 8], strides = [1, 1]} : vector<16x96xf32> to vector<16x8xf32>
    %17 = vector.extract_strided_slice %5 {offsets = [0, 48], sizes = [16, 8], strides = [1, 1]} : vector<16x96xf32> to vector<16x8xf32>
    %18 = vector.extract_strided_slice %5 {offsets = [0, 56], sizes = [16, 8], strides = [1, 1]} : vector<16x96xf32> to vector<16x8xf32>
    %19 = vector.shape_cast %15 : vector<16x8xf32> to vector<1x16x8xf32>
    %20 = vector.shape_cast %16 : vector<16x8xf32> to vector<1x16x8xf32>
    %21 = vector.shape_cast %17 : vector<16x8xf32> to vector<1x16x8xf32>
    %22 = vector.shape_cast %18 : vector<16x8xf32> to vector<1x16x8xf32>
    %23 = tpu.concatenate %19, %20, %21, %22 in 0 : vector<1x16x8xf32>, vector<1x16x8xf32>, vector<1x16x8xf32>, vector<1x16x8xf32> -> vector<4x16x8xf32>
    %24 = vector.extract_strided_slice %5 {offsets = [0, 64], sizes = [16, 8], strides = [1, 1]} : vector<16x96xf32> to vector<16x8xf32>
    %25 = vector.extract_strided_slice %5 {offsets = [0, 72], sizes = [16, 8], strides = [1, 1]} : vector<16x96xf32> to vector<16x8xf32>
    %26 = vector.extract_strided_slice %5 {offsets = [0, 80], sizes = [16, 8], strides = [1, 1]} : vector<16x96xf32> to vector<16x8xf32>
    %27 = vector.extract_strided_slice %5 {offsets = [0, 88], sizes = [16, 8], strides = [1, 1]} : vector<16x96xf32> to vector<16x8xf32>
    %28 = vector.shape_cast %24 : vector<16x8xf32> to vector<1x16x8xf32>
    %29 = vector.shape_cast %25 : vector<16x8xf32> to vector<1x16x8xf32>
    %30 = vector.shape_cast %26 : vector<16x8xf32> to vector<1x16x8xf32>
    %31 = vector.shape_cast %27 : vector<16x8xf32> to vector<1x16x8xf32>
    %32 = tpu.concatenate %28, %29, %30, %31 in 0 : vector<1x16x8xf32>, vector<1x16x8xf32>, vector<1x16x8xf32>, vector<1x16x8xf32> -> vector<4x16x8xf32>
    "tpu.trace_start"() <{level = 10 : i32, message = "hqd,hkd->hqk"}> : () -> ()
    %cst_5 = arith.constant dense<0.000000e+00> : vector<4x16x16xf32>
    %33 = tpu.matmul %14, %23, %cst_5 {dimension_numbers = #tpu.dot_dimension_numbers<[2], [2], [1], [1], [0, 0, 0, 1, 1, 1], [0], [0]>} : vector<4x16x8xf32>, vector<4x16x8xf32>, vector<4x16x16xf32> -> vector<4x16x16xf32>
    "tpu.trace_stop"() : () -> ()
    %c0_6 = arith.constant 0 : index
    %c0_7 = arith.constant 0 : index
    %34 = vector.load %arg2[%c0_6, %c0_7] : memref<16x16xf32, #tpu.memory_space<vmem>>, vector<16x16xf32>
    %35 = vector.shape_cast %34 : vector<16x16xf32> to vector<1x16x16xf32>
    %36 = vector.broadcast %35 : vector<1x16x16xf32> to vector<4x16x16xf32>
    %37 = arith.addf %33, %36 : vector<4x16x16xf32>
    %cst_8 = arith.constant dense<0xFF800000> : vector<4x16xf32>
    %38 = vector.multi_reduction <maximumf>, %37, %cst_8 [2] : vector<4x16x16xf32> to vector<4x16xf32>
    %39 = vector.shape_cast %38 : vector<4x16xf32> to vector<4x16x1xf32>
    %40 = vector.broadcast %39 : vector<4x16x1xf32> to vector<4x16x16xf32>
    %41 = arith.subf %37, %40 : vector<4x16x16xf32>
    %42 = math.exp %41 : vector<4x16x16xf32>
    %cst_9 = arith.constant dense<0.000000e+00> : vector<4x16xf32>
    %43 = vector.multi_reduction <add>, %42, %cst_9 [2] : vector<4x16x16xf32> to vector<4x16xf32>
    %44 = vector.shape_cast %43 : vector<4x16xf32> to vector<4x16x1xf32>
    "tpu.trace_start"() <{level = 10 : i32, message = "hqk,hkd->hqd"}> : () -> ()
    %cst_10 = arith.constant dense<0.000000e+00> : vector<4x16x8xf32>
    %45 = tpu.matmul %42, %32, %cst_10 {dimension_numbers = #tpu.dot_dimension_numbers<[2], [1], [1], [2], [0, 0, 0, 1, 1, 2], [0], [0]>} : vector<4x16x16xf32>, vector<4x16x8xf32>, vector<4x16x8xf32> -> vector<4x16x8xf32>
    "tpu.trace_stop"() : () -> ()
    %46 = vector.broadcast %44 : vector<4x16x1xf32> to vector<4x16x8xf32>
    %47 = arith.divf %45, %46 : vector<4x16x8xf32>
    %48 = vector.extract_strided_slice %47 {offsets = [0, 0, 0], sizes = [1, 16, 8], strides = [1, 1, 1]} : vector<4x16x8xf32> to vector<1x16x8xf32>
    %49 = vector.shape_cast %48 : vector<1x16x8xf32> to vector<16x8xf32>
    %50 = vector.extract_strided_slice %47 {offsets = [1, 0, 0], sizes = [1, 16, 8], strides = [1, 1, 1]} : vector<4x16x8xf32> to vector<1x16x8xf32>
    %51 = vector.shape_cast %50 : vector<1x16x8xf32> to vector<16x8xf32>
    %52 = vector.extract_strided_slice %47 {offsets = [2, 0, 0], sizes = [1, 16, 8], strides = [1, 1, 1]} : vector<4x16x8xf32> to vector<1x16x8xf32>
    %53 = vector.shape_cast %52 : vector<1x16x8xf32> to vector<16x8xf32>
    %54 = vector.extract_strided_slice %47 {offsets = [3, 0, 0], sizes = [1, 16, 8], strides = [1, 1, 1]} : vector<4x16x8xf32> to vector<1x16x8xf32>
    %55 = vector.shape_cast %54 : vector<1x16x8xf32> to vector<16x8xf32>
    %56 = tpu.concatenate %49, %51, %53, %55 in 1 : vector<16x8xf32>, vector<16x8xf32>, vector<16x8xf32>, vector<16x8xf32> -> vector<16x32xf32>
    %c0_11 = arith.constant 0 : index
    %c0_12 = arith.constant 0 : index
    %57 = vector.load %arg5[%c0_11, %c0_12] : memref<32x32xf32, #tpu.memory_space<vmem>>, vector<32x32xf32>
    %cst_13 = arith.constant dense<0.000000e+00> : vector<16x32xf32>
    %58 = tpu.matmul %56, %57, %cst_13 {dimension_numbers = #tpu.dot_dimension_numbers<[1], [0], [0], [1], [0, 0, 1, 1], [], []>} : vector<16x32xf32>, vector<32x32xf32>, vector<16x32xf32> -> vector<16x32xf32>
    %c0_14 = arith.constant 0 : index
    %c0_15 = arith.constant 0 : index
    %59 = vector.load %arg6[%c0_14, %c0_15] : memref<1x32xf32, #tpu.memory_space<vmem>>, vector<1x32xf32>
    %60 = vector.broadcast %59 : vector<1x32xf32> to vector<16x32xf32>
    %61 = arith.addf %58, %60 : vector<16x32xf32>
    %c0_16 = arith.constant 0 : index
    %c0_17 = arith.constant 0 : index
    %62 = vector.load %arg7[%c0_16, %c0_17] : memref<16x32xf32, #tpu.memory_space<vmem>>, vector<16x32xf32>
    tpu.vector_store %arg7[%c0_16, %c0_17], %61 {strides = array<i32>} : memref<16x32xf32, #tpu.memory_space<vmem>>, vector<16x32xf32>,
    return
  }
  func.func @transform_0(%arg0: i32) -> (i32, i32) {
    %c0_i32 = arith.constant 0 : i32
    %c0_i32_0 = arith.constant 0 : i32
    return %arg0, %c0_i32 : i32, i32
  }
  func.func @transform_1(%arg0: i32) -> (i32, i32) {
    %c0_i32 = arith.constant 0 : i32
    %c0_i32_0 = arith.constant 0 : i32
    %c0_i32_1 = arith.constant 0 : i32
    return %c0_i32, %c0_i32_0 : i32, i32
  }
  func.func @transform_2(%arg0: i32) -> (i32, i32) {
    %c0_i32 = arith.constant 0 : i32
    %c0_i32_0 = arith.constant 0 : i32
    %c0_i32_1 = arith.constant 0 : i32
    return %c0_i32, %c0_i32_0 : i32, i32
  }
  func.func @transform_3(%arg0: i32) -> (i32, i32) {
    %c0_i32 = arith.constant 0 : i32
    %c0_i32_0 = arith.constant 0 : i32
    %c0_i32_1 = arith.constant 0 : i32
    return %c0_i32, %c0_i32_0 : i32, i32
  }
  func.func @transform_4(%arg0: i32) -> (i32, i32) {
    %c0_i32 = arith.constant 0 : i32
    %c0_i32_0 = arith.constant 0 : i32
    %c0_i32_1 = arith.constant 0 : i32
    return %c0_i32, %c0_i32_0 : i32, i32
  }
  func.func @transform_5(%arg0: i32) -> (i32, i32) {
    %c0_i32 = arith.constant 0 : i32
    %c0_i32_0 = arith.constant 0 : i32
    %c0_i32_1 = arith.constant 0 : i32
    return %c0_i32, %c0_i32_0 : i32, i32
  }
  func.func @transform_6(%arg0: i32) -> (i32, i32) {
    %c0_i32 = arith.constant 0 : i32
    %c0_i32_0 = arith.constant 0 : i32
    return %arg0, %c0_i32 : i32, i32
  }
}

</mosaic_0001>

<llo_original>
// kernel: tpu_custom_call.1
$region0: #{tpu_custom_call.1}
  #allocation0 [shape = 'u32[]', space=smem, size = 0x4, offset = 0x4, fixed_abs, tag = 'smem constant byte address 0x4 - core index']
  #allocation1 [shape = 'u32[144,128]{1,0:T(1,128)}', space=vmem, size = 0x12000, scoped, tag = 'internal scratch']
  %s0 = inlined_call_operand.hbm [shape: f32[16,32], index: 0, kind: input, shape index: {}]
  %s1 = inlined_call_operand.hbm [shape: f32[16,16], index: 1, kind: input, shape index: {}]
  %s2 = inlined_call_operand.hbm [shape: f32[32,96], index: 2, kind: input, shape index: {}]
  %s3 = inlined_call_operand.vmem [shape: f32[1,96], index: 3, kind: input, shape index: {}]
  %s4 = inlined_call_operand.hbm [shape: f32[32,32], index: 4, kind: input, shape index: {}]
  %s5 = inlined_call_operand.vmem [shape: f32[1,32], index: 5, kind: input, shape index: {}]
  %s6 = inlined_call_operand.hbm [shape: f32[16,32], index: 6, kind: output, shape index: {}]
  %s7 = sld [smem:[#allocation0]]
  $region50: #{tpu_custom_call.1} parent=0
    _
  %s9 = ssub.s32 1, %s7
  %s10 = scalar_select 0, %s9, %s7
  $region1: #{tpu_custom_call.1} parent=0
    #allocation2 [shape = 'u8[8192]{0}', space=vmem, size = 0x2000, scoped, tag = 'input window, operand 0, single buffered']
    #allocation3 [shape = 's32[1]{0}', space=sflag, size = 0x4, scoped, tag = 'scoped memory for tpu_custom_call.1']
    #allocation4 [shape = 's32[1]{0}', space=sflag, size = 0x4, scoped, tag = 'scoped memory for tpu_custom_call.1']
    #allocation5 [shape = 'u8[8192]{0}', space=vmem, size = 0x2000, scoped, tag = 'input window, operand 1, single buffered']
    #allocation6 [shape = 's32[1]{0}', space=sflag, size = 0x4, scoped, tag = 'scoped memory for tpu_custom_call.1']
    #allocation7 [shape = 'u8[16384]{0}', space=vmem, size = 0x4000, scoped, tag = 'input window, operand 2, single buffered']
    #allocation8 [shape = 'u8[16384]{0}', space=vmem, size = 0x4000, scoped, tag = 'input window, operand 4, single buffered']
    #allocation9 [shape = 's32[1]{0}', space=sflag, size = 0x4, scoped, tag = 'scoped memory for tpu_custom_call.1']
    #allocation10 [shape = 'u8[8192]{0}', space=vmem, size = 0x2000, scoped, tag = 'output window, operand 0, single buffered']
    %11 = vsyncpa [#allocation3], 0
    %12 = vsyncpa [#allocation6], 0
    %13 = vsyncpa [#allocation9], 0
    %14 = vsyncpa [#allocation4], 0
    // Predicated region
    $region2: #{tpu_custom_call.1} parent=1 // pred_check
      _
    $region3: #{tpu_custom_call.1} parent=1 // pred_check_branch
      %16 = sbr.rel (0) target = $region5
    $region4: #{tpu_custom_call.1} parent=1 // pred_region
      %s18 = ssub.s32 256, 256
      %19 = vsyncadd [#allocation3], %s18
      %s20 = sshll.u32 [#allocation2], 4
      %s21 = int_to_ptr.vmem [resolvable:$true] %s20
      %26 = dma.hbm_to_vmem [thread:$0]  %s0, 256, %s21, [#allocation3], 128, 128, 8
    $region5: #{tpu_custom_call.1} parent=1 // pred_fallthru
      _
    // Predicated region
    $region6: #{tpu_custom_call.1} parent=1 // pred_check
      _
    $region7: #{tpu_custom_call.1} parent=1 // pred_check_branch
      %28 = sbr.rel (0) target = $region9
    $region8: #{tpu_custom_call.1} parent=1 // pred_region
      %s30 = ssub.s32 256, 256
      %31 = vsyncadd [#allocation6], %s30
      %s32 = sshll.u32 [#allocation5], 4
      %s33 = int_to_ptr.vmem [resolvable:$true] %s32
      %38 = dma.hbm_to_vmem [thread:$0]  %s1, 256, %s33, [#allocation6], 128, 128, 8
    $region9: #{tpu_custom_call.1} parent=1 // pred_fallthru
      _
    // Predicated region
    $region10: #{tpu_custom_call.1} parent=1 // pred_check
      _
    $region11: #{tpu_custom_call.1} parent=1 // pred_check_branch
      %40 = sbr.rel (0) target = $region13
    $region12: #{tpu_custom_call.1} parent=1 // pred_region
      %s42 = ssub.s32 512, 512
      %43 = vsyncadd [#allocation6], %s42
      %s44 = sshll.u32 [#allocation7], 4
      %s45 = int_to_ptr.vmem [resolvable:$true] %s44
      %50 = dma.hbm_to_vmem [thread:$0]  %s2, 512, %s45, [#allocation6], 128, 128, 8
    $region13: #{tpu_custom_call.1} parent=1 // pred_fallthru
      _
    // Predicated region
    $region14: #{tpu_custom_call.1} parent=1 // pred_check
      _
    $region15: #{tpu_custom_call.1} parent=1 // pred_check_branch
      %52 = sbr.rel (0) target = $region17
    $region16: #{tpu_custom_call.1} parent=1 // pred_region
      _
    $region17: #{tpu_custom_call.1} parent=1 // pred_fallthru
      _
    // Predicated region
    $region18: #{tpu_custom_call.1} parent=1 // pred_check
      _
    $region19: #{tpu_custom_call.1} parent=1 // pred_check_branch
      %54 = sbr.rel (0) target = $region21
    $region20: #{tpu_custom_call.1} parent=1 // pred_region
      %s56 = ssub.s32 512, 512
      %57 = vsyncadd [#allocation9], %s56
      %s58 = sshll.u32 [#allocation8], 4
      %s59 = int_to_ptr.vmem [resolvable:$true] %s58
      %64 = dma.hbm_to_vmem [thread:$0]  %s4, 512, %s59, [#allocation9], 128, 128, 8
    $region21: #{tpu_custom_call.1} parent=1 // pred_fallthru
      _
    // Predicated region
    $region22: #{tpu_custom_call.1} parent=1 // pred_check
      _
    $region23: #{tpu_custom_call.1} parent=1 // pred_check_branch
      %66 = sbr.rel (0) target = $region25
    $region24: #{tpu_custom_call.1} parent=1 // pred_region
      _
    $region25: #{tpu_custom_call.1} parent=1 // pred_fallthru
      _
    // Predicated region
    $region26: #{tpu_custom_call.1} parent=1 // pred_check
      _
    $region27: #{tpu_custom_call.1} parent=1 // pred_check_branch
      %68 = sbr.rel (0) target = $region29
    $region28: #{tpu_custom_call.1} parent=1 // pred_region
      %69 = dma.done [#allocation3], 256
    $region29: #{tpu_custom_call.1} parent=1 // pred_fallthru
      _
    // Predicated region
    $region30: #{tpu_custom_call.1} parent=1 // pred_check
      _
    $region31: #{tpu_custom_call.1} parent=1 // pred_check_branch
      %71 = sbr.rel (0) target = $region33
    $region32: #{tpu_custom_call.1} parent=1 // pred_region
      %72 = dma.done [#allocation6], 256
    $region33: #{tpu_custom_call.1} parent=1 // pred_fallthru
      _
    // Predicated region
    $region34: #{tpu_custom_call.1} parent=1 // pred_check
      _
    $region35: #{tpu_custom_call.1} parent=1 // pred_check_branch
      %74 = sbr.rel (0) target = $region37
    $region36: #{tpu_custom_call.1} parent=1 // pred_region
      %75 = dma.done [#allocation6], 512
    $region37: #{tpu_custom_call.1} parent=1 // pred_fallthru
      _
    // Predicated region
    $region38: #{tpu_custom_call.1} parent=1 // pred_check
      _
    $region39: #{tpu_custom_call.1} parent=1 // pred_check_branch
      %77 = sbr.rel (0) target = $region41
    $region40: #{tpu_custom_call.1} parent=1 // pred_region
      %78 = dma.done [#allocation9], 512
    $region41: #{tpu_custom_call.1} parent=1 // pred_fallthru
      _
    %v79 = vld [vmem:[#allocation2] sm:$0xff]
    %v80 = vld [vmem:[#allocation2 + $0x8] sm:$0xff]
    %v81 = vld [vmem:[#allocation7] sm:$0xff]
    %v82 = vld [vmem:[#allocation7 + $0x8] sm:$0xff]
    %v83 = vld [vmem:[#allocation7 + $0x10] sm:$0xff]
    %v84 = vld [vmem:[#allocation7 + $0x18] sm:$0xff]
    %v85 = vld [vmem:[%s3] sm:$0x1]
    %v87 = vlaneseq
    %v88 = vshrl.u32 %v87, 7
    %v89 = vsub.s32 0, %v88
    %v90 = vrot.slane %v85, %v89
    %vm92 = vcmask 261120
    %v94 = vsel %vm92, %v79, 0
    %v97 = vsel %vm92, %v80, 0
    %99 = vmatprep.subr.mxu0 0.0
    %100 = vmatpush1.msra.mxu0 0.0
    %101 = vmatprep.subr.mxu0 0.0
    %102 = vmatpush1.msra.mxu0 0.0
    %103 = vmatprep.subr.mxu0 0.0
    %104 = vmatpush1.msra.mxu0 0.0
    %105 = vmatprep.subr.mxu0 0.0
    %106 = vmatpush1.msra.mxu0 0.0
    %107 = vmatprep.subr.mxu0 0.0
    %108 = vmatpush1.msra.mxu0 0.0
    %109 = vmatprep.subr.mxu0 0.0
    %110 = vmatpush1.msra.mxu0 0.0
    %111 = vmatprep.subr.mxu0 0.0
    %112 = vmatpush1.msra.mxu0 0.0
    %113 = vmatprep.subr.mxu0 0.0
    %114 = vmatpush1.msra.mxu0 0.0
    %115 = vmatprep.subr.mxu0 0.0
    %116 = vmatpush1.msra.mxu0 0.0
    %117 = vmatprep.subr.mxu0 0.0
    %118 = vmatpush1.msra.mxu0 0.0
    %119 = vmatprep.subr.mxu0 0.0
    %120 = vmatpush1.msra.mxu0 0.0
    %121 = vmatprep.subr.mxu0 0.0
    %122 = vmatpush1.msra.mxu0 0.0
    %123 = vmatprep.subr.mxu0 0.0
    %124 = vmatpush1.msra.mxu0 %v84
    %125 = vmatprep.subr.mxu0 0.0
    %126 = vmatpush1.msra.mxu0 %v83
    %127 = vmatprep.subr.mxu0 0.0
    %128 = vmatpush1.msra.mxu0 %v82
    %129 = vmatprep.subr.mxu0 0.0
    %130 = vmatpush1.msra.mxu0 %v81
    %131 = vmatprep.subr.mxu0 0.0
    %132 = vmatpush2.msra.mxu0 0.0
    %133 = vmatprep.subr.mxu0 0.0
    %134 = vmatpush2.msra.mxu0 0.0
    %135 = vmatprep.subr.mxu0 0.0
    %136 = vmatpush2.msra.mxu0 0.0
    %137 = vmatprep.subr.mxu0 0.0
    %138 = vmatpush2.msra.mxu0 0.0
    %139 = vmatprep.subr.mxu0 0.0
    %140 = vmatpush2.msra.mxu0 0.0
    %141 = vmatprep.subr.mxu0 0.0
    %142 = vmatpush2.msra.mxu0 0.0
    %143 = vmatprep.subr.mxu0 0.0
    %144 = vmatpush2.msra.mxu0 0.0
    %145 = vmatprep.subr.mxu0 0.0
    %146 = vmatpush2.msra.mxu0 0.0
    %147 = vmatprep.subr.mxu0 0.0
    %148 = vmatpush2.msra.mxu0 0.0
    %149 = vmatprep.subr.mxu0 0.0
    %150 = vmatpush2.msra.mxu0 0.0
    %151 = vmatprep.subr.mxu0 0.0
    %152 = vmatpush2.msra.mxu0 0.0
    %153 = vmatprep.subr.mxu0 0.0
    %154 = vmatpush2.msra.mxu0 0.0
    %155 = vmatprep.subr.mxu0 0.0
    %156 = vmatpush2.msra.mxu0 0.0
    %157 = vmatprep.subr.mxu0 0.0
    %158 = vmatpush2.msra.mxu0 0.0
    %159 = vmatprep.subr.mxu0 0.0
    %160 = vmatpush2.msra.mxu0 0.0
    %161 = vmatprep.subr.mxu0 0.0
    %162 = vmatpush2.msra.mxu0 0.0
    %163 = vmatprep.mubr.f32.mxu0 0.0
    %164 = vmatmul.mubr.f32.gmra.mxu0 %v94
    %v165 = vpop.f32.mrf.mxu0
    %v166 = vadd.f32 %v90, %v165
    %v167 = vpop.f32.mrf.mxu0
    %168 = vmatprep.mubr.f32.mxu0 0.0
    %169 = vmatmul.mubr.f32.gmra.mxu0 %v97
    %v170 = vpop.f32.mrf.mxu0
    %v171 = vadd.f32 %v90, %v170
    %v172 = vpop.f32.mrf.mxu0
    %173 = vdwg.mxu0
    %176 = vrot.lane.b32.xlu0 %v166, 120
    %v177 = vpop.permute.xlu0 %176
    %178 = vrot.lane.b32.xlu0 %v171, 120
    %v179 = vpop.permute.xlu0 %178
    %180 = vrot.lane.b32.xlu0 %v166, 112
    %v181 = vpop.permute.xlu0 %180
    %182 = vrot.lane.b32.xlu0 %v171, 112
    %v183 = vpop.permute.xlu0 %182
    %184 = vrot.lane.b32.xlu0 %v166, 104
    %v185 = vpop.permute.xlu0 %184
    %186 = vrot.lane.b32.xlu0 %v171, 104
    %v187 = vpop.permute.xlu0 %186
    %v188 = vld [vmem:[#allocation5] sm:$0xff]
    %v189 = vld [vmem:[#allocation5 + $0x8] sm:$0xff]
    %190 = vrot.lane.b32.xlu0 %v166, 96
    %v191 = vpop.permute.xlu0 %190
    %192 = vrot.lane.b32.xlu0 %v171, 96
    %v193 = vpop.permute.xlu0 %192
    %vm194 = vcmask 64512
    %v195 = vsel %vm194, %v166, 0
    %v197 = vsel %vm194, %v171, 0
    %v199 = vsel %vm194, %v191, 0
    %v201 = vsel %vm194, %v193, 0
    %203 = vmatprep.subr.mxu0 0.0
    %204 = vmatpush1.xpose.msra.mxu0 0.0
    %205 = vmatprep.subr.mxu0 0.0
    %206 = vmatpush1.xpose.msra.mxu0 0.0
    %207 = vmatprep.subr.mxu0 0.0
    %208 = vmatpush1.xpose.msra.mxu0 0.0
    %209 = vmatprep.subr.mxu0 0.0
    %210 = vmatpush1.xpose.msra.mxu0 0.0
    %211 = vmatprep.subr.mxu0 0.0
    %212 = vmatpush1.xpose.msra.mxu0 0.0
    %213 = vmatprep.subr.mxu0 0.0
    %214 = vmatpush1.xpose.msra.mxu0 0.0
    %215 = vmatprep.subr.mxu0 0.0
    %216 = vmatpush1.xpose.msra.mxu0 0.0
    %217 = vmatprep.subr.mxu0 0.0
    %218 = vmatpush1.xpose.msra.mxu0 0.0
    %219 = vmatprep.subr.mxu0 0.0
    %220 = vmatpush1.xpose.msra.mxu0 0.0
    %221 = vmatprep.subr.mxu0 0.0
    %222 = vmatpush1.xpose.msra.mxu0 0.0
    %223 = vmatprep.subr.mxu0 0.0
    %224 = vmatpush1.xpose.msra.mxu0 0.0
    %225 = vmatprep.subr.mxu0 0.0
    %226 = vmatpush1.xpose.msra.mxu0 0.0
    %227 = vmatprep.subr.mxu0 0.0
    %228 = vmatpush1.xpose.msra.mxu0 0.0
    %229 = vmatprep.subr.mxu0 0.0
    %230 = vmatpush1.xpose.msra.mxu0 0.0
    %231 = vmatprep.subr.mxu0 0.0
    %232 = vmatpush1.xpose.msra.mxu0 %v201
    %233 = vmatprep.subr.mxu0 0.0
    %234 = vmatpush1.xpose.msra.mxu0 %v199
    %235 = vmatprep.subr.mxu0 0.0
    %236 = vmatpush2.xpose.msra.mxu0 0.0
    %237 = vmatprep.subr.mxu0 0.0
    %238 = vmatpush2.xpose.msra.mxu0 0.0
    %239 = vmatprep.subr.mxu0 0.0
    %240 = vmatpush2.xpose.msra.mxu0 0.0
    %241 = vmatprep.subr.mxu0 0.0
    %242 = vmatpush2.xpose.msra.mxu0 0.0
    %243 = vmatprep.subr.mxu0 0.0
    %244 = vmatpush2.xpose.msra.mxu0 0.0
    %245 = vmatprep.subr.mxu0 0.0
    %246 = vmatpush2.xpose.msra.mxu0 0.0
    %247 = vmatprep.subr.mxu0 0.0
    %248 = vmatpush2.xpose.msra.mxu0 0.0
    %249 = vmatprep.subr.mxu0 0.0
    %250 = vmatpush2.xpose.msra.mxu0 0.0
    %251 = vmatprep.subr.mxu0 0.0
    %252 = vmatpush2.xpose.msra.mxu0 0.0
    %253 = vmatprep.subr.mxu0 0.0
    %254 = vmatpush2.xpose.msra.mxu0 0.0
    %255 = vmatprep.subr.mxu0 0.0
    %256 = vmatpush2.xpose.msra.mxu0 0.0
    %257 = vmatprep.subr.mxu0 0.0
    %258 = vmatpush2.xpose.msra.mxu0 0.0
    %259 = vmatprep.subr.mxu0 0.0
    %260 = vmatpush2.xpose.msra.mxu0 0.0
    %261 = vmatprep.subr.mxu0 0.0
    %262 = vmatpush2.xpose.msra.mxu0 0.0
    %263 = vmatprep.subr.mxu0 0.0
    %264 = vmatpush2.xpose.msra.mxu0 0.0
    %265 = vmatprep.subr.mxu0 0.0
    %266 = vmatpush2.xpose.msra.mxu0 0.0
    %267 = vmatprep.mubr.f32.mxu0 0.0
    %268 = vmatmul.mubr.f32.gmra.mxu0 %v195
    %v269 = vpop.f32.mrf.mxu0
    %v270 = vadd.f32 %v188, %v269
    %v271 = vpop.f32.mrf.mxu0
    %272 = vmatprep.mubr.f32.mxu0 0.0
    %273 = vmatmul.mubr.f32.gmra.mxu0 %v197
    %v274 = vpop.f32.mrf.mxu0
    %v275 = vadd.f32 %v189, %v274
    %v276 = vpop.f32.mrf.mxu0
    %277 = vdwg.mxu0
    %278 = vrot.lane.b32.xlu0 %v177, 96
    %v279 = vpop.permute.xlu0 %278
    %280 = vrot.lane.b32.xlu0 %v179, 96
    %v281 = vpop.permute.xlu0 %280
    %v282 = vsel %vm194, %v177, 0
    %v284 = vsel %vm194, %v179, 0
    %v286 = vsel %vm194, %v279, 0
    %v288 = vsel %vm194, %v281, 0
    %290 = vmatprep.subr.mxu0 0.0
    %291 = vmatpush1.xpose.msra.mxu0 0.0
    %292 = vmatprep.subr.mxu0 0.0
    %293 = vmatpush1.xpose.msra.mxu0 0.0
    %294 = vmatprep.subr.mxu0 0.0
    %295 = vmatpush1.xpose.msra.mxu0 0.0
    %296 = vmatprep.subr.mxu0 0.0
    %297 = vmatpush1.xpose.msra.mxu0 0.0
    %298 = vmatprep.subr.mxu0 0.0
    %299 = vmatpush1.xpose.msra.mxu0 0.0
    %300 = vmatprep.subr.mxu0 0.0
    %301 = vmatpush1.xpose.msra.mxu0 0.0
    %302 = vmatprep.subr.mxu0 0.0
    %303 = vmatpush1.xpose.msra.mxu0 0.0
    %304 = vmatprep.subr.mxu0 0.0
    %305 = vmatpush1.xpose.msra.mxu0 0.0
    %306 = vmatprep.subr.mxu0 0.0
    %307 = vmatpush1.xpose.msra.mxu0 0.0
    %308 = vmatprep.subr.mxu0 0.0
    %309 = vmatpush1.xpose.msra.mxu0 0.0
    %310 = vmatprep.subr.mxu0 0.0
    %311 = vmatpush1.xpose.msra.mxu0 0.0
    %312 = vmatprep.subr.mxu0 0.0
    %313 = vmatpush1.xpose.msra.mxu0 0.0
    %314 = vmatprep.subr.mxu0 0.0
    %315 = vmatpush1.xpose.msra.mxu0 0.0
    %316 = vmatprep.subr.mxu0 0.0
    %317 = vmatpush1.xpose.msra.mxu0 0.0
    %318 = vmatprep.subr.mxu0 0.0
    %319 = vmatpush1.xpose.msra.mxu0 %v288
    %320 = vmatprep.subr.mxu0 0.0
    %321 = vmatpush1.xpose.msra.mxu0 %v286
    %322 = vmatprep.subr.mxu0 0.0
    %323 = vmatpush2.xpose.msra.mxu0 0.0
    %324 = vmatprep.subr.mxu0 0.0
    %325 = vmatpush2.xpose.msra.mxu0 0.0
    %326 = vmatprep.subr.mxu0 0.0
    %327 = vmatpush2.xpose.msra.mxu0 0.0
    %328 = vmatprep.subr.mxu0 0.0
    %329 = vmatpush2.xpose.msra.mxu0 0.0
    %330 = vmatprep.subr.mxu0 0.0
    %331 = vmatpush2.xpose.msra.mxu0 0.0
    %332 = vmatprep.subr.mxu0 0.0
    %333 = vmatpush2.xpose.msra.mxu0 0.0
    %334 = vmatprep.subr.mxu0 0.0
    %335 = vmatpush2.xpose.msra.mxu0 0.0
    %336 = vmatprep.subr.mxu0 0.0
    %337 = vmatpush2.xpose.msra.mxu0 0.0
    %338 = vmatprep.subr.mxu0 0.0
    %339 = vmatpush2.xpose.msra.mxu0 0.0
    %340 = vmatprep.subr.mxu0 0.0
    %341 = vmatpush2.xpose.msra.mxu0 0.0
    %342 = vmatprep.subr.mxu0 0.0
    %343 = vmatpush2.xpose.msra.mxu0 0.0
    %344 = vmatprep.subr.mxu0 0.0
    %345 = vmatpush2.xpose.msra.mxu0 0.0
    %346 = vmatprep.subr.mxu0 0.0
    %347 = vmatpush2.xpose.msra.mxu0 0.0
    %348 = vmatprep.subr.mxu0 0.0
    %349 = vmatpush2.xpose.msra.mxu0 0.0
    %350 = vmatprep.subr.mxu0 0.0
    %351 = vmatpush2.xpose.msra.mxu0 0.0
    %352 = vmatprep.subr.mxu0 0.0
    %353 = vmatpush2.xpose.msra.mxu0 0.0
    %354 = vmatprep.mubr.f32.mxu0 0.0
    %355 = vmatmul.mubr.f32.gmra.mxu0 %v282
    %v356 = vpop.f32.mrf.mxu0
    %v357 = vadd.f32 %v188, %v356
    %v358 = vpop.f32.mrf.mxu0
    %359 = vmatprep.mubr.f32.mxu0 0.0
    %360 = vmatmul.mubr.f32.gmra.mxu0 %v284
    %v361 = vpop.f32.mrf.mxu0
    %v362 = vadd.f32 %v189, %v361
    %v363 = vpop.f32.mrf.mxu0
    %364 = vdwg.mxu0
    %365 = vrot.lane.b32.xlu0 %v181, 96
    %v366 = vpop.permute.xlu0 %365
    %367 = vrot.lane.b32.xlu0 %v183, 96
    %v368 = vpop.permute.xlu0 %367
    %v369 = vsel %vm194, %v181, 0
    %v371 = vsel %vm194, %v183, 0
    %v373 = vsel %vm194, %v366, 0
    %v375 = vsel %vm194, %v368, 0
    %377 = vmatprep.subr.mxu0 0.0
    %378 = vmatpush1.xpose.msra.mxu0 0.0
    %379 = vmatprep.subr.mxu0 0.0
    %380 = vmatpush1.xpose.msra.mxu0 0.0
    %381 = vmatprep.subr.mxu0 0.0
    %382 = vmatpush1.xpose.msra.mxu0 0.0
    %383 = vmatprep.subr.mxu0 0.0
    %384 = vmatpush1.xpose.msra.mxu0 0.0
    %385 = vmatprep.subr.mxu0 0.0
    %386 = vmatpush1.xpose.msra.mxu0 0.0
    %387 = vmatprep.subr.mxu0 0.0
    %388 = vmatpush1.xpose.msra.mxu0 0.0
    %389 = vmatprep.subr.mxu0 0.0
    %390 = vmatpush1.xpose.msra.mxu0 0.0
    %391 = vmatprep.subr.mxu0 0.0
    %392 = vmatpush1.xpose.msra.mxu0 0.0
    %393 = vmatprep.subr.mxu0 0.0
    %394 = vmatpush1.xpose.msra.mxu0 0.0
    %395 = vmatprep.subr.mxu0 0.0
    %396 = vmatpush1.xpose.msra.mxu0 0.0
    %397 = vmatprep.subr.mxu0 0.0
    %398 = vmatpush1.xpose.msra.mxu0 0.0
    %399 = vmatprep.subr.mxu0 0.0
    %400 = vmatpush1.xpose.msra.mxu0 0.0
    %401 = vmatprep.subr.mxu0 0.0
    %402 = vmatpush1.xpose.msra.mxu0 0.0
    %403 = vmatprep.subr.mxu0 0.0
    %404 = vmatpush1.xpose.msra.mxu0 0.0
    %405 = vmatprep.subr.mxu0 0.0
    %406 = vmatpush1.xpose.msra.mxu0 %v375
    %407 = vmatprep.subr.mxu0 0.0
    %408 = vmatpush1.xpose.msra.mxu0 %v373
    %409 = vmatprep.subr.mxu0 0.0
    %410 = vmatpush2.xpose.msra.mxu0 0.0
    %411 = vmatprep.subr.mxu0 0.0
    %412 = vmatpush2.xpose.msra.mxu0 0.0
    %413 = vmatprep.subr.mxu0 0.0
    %414 = vmatpush2.xpose.msra.mxu0 0.0
    %415 = vmatprep.subr.mxu0 0.0
    %416 = vmatpush2.xpose.msra.mxu0 0.0
    %417 = vmatprep.subr.mxu0 0.0
    %418 = vmatpush2.xpose.msra.mxu0 0.0
    %419 = vmatprep.subr.mxu0 0.0
    %420 = vmatpush2.xpose.msra.mxu0 0.0
    %421 = vmatprep.subr.mxu0 0.0
    %422 = vmatpush2.xpose.msra.mxu0 0.0
    %423 = vmatprep.subr.mxu0 0.0
    %424 = vmatpush2.xpose.msra.mxu0 0.0
    %425 = vmatprep.subr.mxu0 0.0
    %426 = vmatpush2.xpose.msra.mxu0 0.0
    %427 = vmatprep.subr.mxu0 0.0
    %428 = vmatpush2.xpose.msra.mxu0 0.0
    %429 = vmatprep.subr.mxu0 0.0
    %430 = vmatpush2.xpose.msra.mxu0 0.0
    %431 = vmatprep.subr.mxu0 0.0
    %432 = vmatpush2.xpose.msra.mxu0 0.0
    %433 = vmatprep.subr.mxu0 0.0
    %434 = vmatpush2.xpose.msra.mxu0 0.0
    %435 = vmatprep.subr.mxu0 0.0
    %436 = vmatpush2.xpose.msra.mxu0 0.0
    %437 = vmatprep.subr.mxu0 0.0
    %438 = vmatpush2.xpose.msra.mxu0 0.0
    %439 = vmatprep.subr.mxu0 0.0
    %440 = vmatpush2.xpose.msra.mxu0 0.0
    %441 = vmatprep.mubr.f32.mxu0 0.0
    %442 = vmatmul.mubr.f32.gmra.mxu0 %v369
    %v443 = vpop.f32.mrf.mxu0
    %v444 = vadd.f32 %v188, %v443
    %v445 = vpop.f32.mrf.mxu0
    %446 = vmatprep.mubr.f32.mxu0 0.0
    %447 = vmatmul.mubr.f32.gmra.mxu0 %v371
    %v448 = vpop.f32.mrf.mxu0
    %v449 = vadd.f32 %v189, %v448
    %v450 = vpop.f32.mrf.mxu0
    %451 = vdwg.mxu0
    %452 = vrot.lane.b32.xlu0 %v185, 96
    %v453 = vpop.permute.xlu0 %452
    %454 = vrot.lane.b32.xlu0 %v187, 96
    %v455 = vpop.permute.xlu0 %454
    %v456 = vsel %vm194, %v185, 0
    %v458 = vsel %vm194, %v187, 0
    %v460 = vsel %vm194, %v453, 0
    %v462 = vsel %vm194, %v455, 0
    %464 = vmatprep.subr.mxu0 0.0
    %465 = vmatpush1.xpose.msra.mxu0 0.0
    %466 = vmatprep.subr.mxu0 0.0
    %467 = vmatpush1.xpose.msra.mxu0 0.0
    %468 = vmatprep.subr.mxu0 0.0
    %469 = vmatpush1.xpose.msra.mxu0 0.0
    %470 = vmatprep.subr.mxu0 0.0
    %471 = vmatpush1.xpose.msra.mxu0 0.0
    %472 = vmatprep.subr.mxu0 0.0
    %473 = vmatpush1.xpose.msra.mxu0 0.0
    %474 = vmatprep.subr.mxu0 0.0
    %475 = vmatpush1.xpose.msra.mxu0 0.0
    %476 = vmatprep.subr.mxu0 0.0
    %477 = vmatpush1.xpose.msra.mxu0 0.0
    %478 = vmatprep.subr.mxu0 0.0
    %479 = vmatpush1.xpose.msra.mxu0 0.0
    %480 = vmatprep.subr.mxu0 0.0
    %481 = vmatpush1.xpose.msra.mxu0 0.0
    %482 = vmatprep.subr.mxu0 0.0
    %483 = vmatpush1.xpose.msra.mxu0 0.0
    %484 = vmatprep.subr.mxu0 0.0
    %485 = vmatpush1.xpose.msra.mxu0 0.0
    %486 = vmatprep.subr.mxu0 0.0
    %487 = vmatpush1.xpose.msra.mxu0 0.0
    %488 = vmatprep.subr.mxu0 0.0
    %489 = vmatpush1.xpose.msra.mxu0 0.0
    %490 = vmatprep.subr.mxu0 0.0
    %491 = vmatpush1.xpose.msra.mxu0 0.0
    %492 = vmatprep.subr.mxu0 0.0
    %493 = vmatpush1.xpose.msra.mxu0 %v462
    %494 = vmatprep.subr.mxu0 0.0
    %495 = vmatpush1.xpose.msra.mxu0 %v460
    %496 = vmatprep.subr.mxu0 0.0
    %497 = vmatpush2.xpose.msra.mxu0 0.0
    %498 = vmatprep.subr.mxu0 0.0
    %499 = vmatpush2.xpose.msra.mxu0 0.0
    %500 = vmatprep.subr.mxu0 0.0
    %501 = vmatpush2.xpose.msra.mxu0 0.0
    %502 = vmatprep.subr.mxu0 0.0
    %503 = vmatpush2.xpose.msra.mxu0 0.0
    %504 = vmatprep.subr.mxu0 0.0
    %505 = vmatpush2.xpose.msra.mxu0 0.0
    %506 = vmatprep.subr.mxu0 0.0
    %507 = vmatpush2.xpose.msra.mxu0 0.0
    %508 = vmatprep.subr.mxu0 0.0
    %509 = vmatpush2.xpose.msra.mxu0 0.0
    %510 = vmatprep.subr.mxu0 0.0
    %511 = vmatpush2.xpose.msra.mxu0 0.0
    %512 = vmatprep.subr.mxu0 0.0
    %513 = vmatpush2.xpose.msra.mxu0 0.0
    %514 = vmatprep.subr.mxu0 0.0
    %515 = vmatpush2.xpose.msra.mxu0 0.0
    %516 = vmatprep.subr.mxu0 0.0
    %517 = vmatpush2.xpose.msra.mxu0 0.0
    %518 = vmatprep.subr.mxu0 0.0
    %519 = vmatpush2.xpose.msra.mxu0 0.0
    %520 = vmatprep.subr.mxu0 0.0
    %521 = vmatpush2.xpose.msra.mxu0 0.0
    %522 = vmatprep.subr.mxu0 0.0
    %523 = vmatpush2.xpose.msra.mxu0 0.0
    %524 = vmatprep.subr.mxu0 0.0
    %525 = vmatpush2.xpose.msra.mxu0 0.0
    %526 = vmatprep.subr.mxu0 0.0
    %527 = vmatpush2.xpose.msra.mxu0 0.0
    %528 = vmatprep.mubr.f32.mxu0 0.0
    %529 = vmatmul.mubr.f32.gmra.mxu0 %v456
    %v530 = vpop.f32.mrf.mxu0
    %v531 = vadd.f32 %v188, %v530
    %v532 = vpop.f32.mrf.mxu0
    %533 = vmatprep.mubr.f32.mxu0 0.0
    %534 = vmatmul.mubr.f32.gmra.mxu0 %v458
    %v535 = vpop.f32.mrf.mxu0
    %v536 = vadd.f32 %v189, %v535
    %v537 = vpop.f32.mrf.mxu0
    %538 = vdwg.mxu0
    %vm539 = vcmask 130048
    %v540 = vsel %vm539, %v270, -inf
    %541 = vmax.xlane.f32.xlu0 %v540
    %v542 = vpop.xlane.xlu0 %541
    %v543 = vsel %vm539, %v275, -inf
    %544 = vmax.xlane.f32.xlu0 %v543
    %v545 = vpop.xlane.xlu0 %544
    %v546 = vsel %vm539, %v357, -inf
    %547 = vmax.xlane.f32.xlu0 %v546
    %v548 = vpop.xlane.xlu0 %547
    %v549 = vsel %vm539, %v362, -inf
    %550 = vmax.xlane.f32.xlu0 %v549
    %v551 = vpop.xlane.xlu0 %550
    %v552 = vsel %vm539, %v444, -inf
    %553 = vmax.xlane.f32.xlu0 %v552
    %v554 = vpop.xlane.xlu0 %553
    %v555 = vsel %vm539, %v449, -inf
    %556 = vmax.xlane.f32.xlu0 %v555
    %v557 = vpop.xlane.xlu0 %556
    %v558 = vsel %vm539, %v531, -inf
    %559 = vmax.xlane.f32.xlu0 %v558
    %v560 = vpop.xlane.xlu0 %559
    %v561 = vsel %vm539, %v536, -inf
    %562 = vmax.xlane.f32.xlu0 %v561
    %v563 = vpop.xlane.xlu0 %562
    %v564 = vsub.f32 %v270, %v542
    %v565 = vsub.f32 %v275, %v545
    %v566 = vsub.f32 %v357, %v548
    %v567 = vsub.f32 %v362, %v551
    %v568 = vsub.f32 %v444, %v554
    %v569 = vsub.f32 %v449, %v557
    %v570 = vsub.f32 %v531, %v560
    %v571 = vsub.f32 %v536, %v563
    %v572 = vmul.f32 %v564, 1.442695
    %v573 = vpow.pop %v572
    %v574 = vmul.f32 %v565, 1.442695
    %v575 = vpow.pop %v574
    %v576 = vmul.f32 %v566, 1.442695
    %v577 = vpow.pop %v576
    %v578 = vmul.f32 %v567, 1.442695
    %v579 = vpow.pop %v578
    %v580 = vmul.f32 %v568, 1.442695
    %v581 = vpow.pop %v580
    %v582 = vmul.f32 %v569, 1.442695
    %v583 = vpow.pop %v582
    %v584 = vmul.f32 %v570, 1.442695
    %v585 = vpow.pop %v584
    %v586 = vmul.f32 %v571, 1.442695
    %v587 = vpow.pop %v586
    %v588 = vsel %vm539, %v573, 0.0
    %589 = vadd.xlane.f32.xlu0 %v588
    %v590 = vpop.xlane.xlu0 %589
    %v591 = vsel %vm539, %v575, 0.0
    %592 = vadd.xlane.f32.xlu0 %v591
    %v593 = vpop.xlane.xlu0 %592
    %v594 = vsel %vm539, %v577, 0.0
    %595 = vadd.xlane.f32.xlu0 %v594
    %v596 = vpop.xlane.xlu0 %595
    %v597 = vsel %vm539, %v579, 0.0
    %598 = vadd.xlane.f32.xlu0 %v597
    %v599 = vpop.xlane.xlu0 %598
    %v600 = vsel %vm539, %v581, 0.0
    %601 = vadd.xlane.f32.xlu0 %v600
    %v602 = vpop.xlane.xlu0 %601
    %v603 = vsel %vm539, %v583, 0.0
    %604 = vadd.xlane.f32.xlu0 %v603
    %v605 = vpop.xlane.xlu0 %604
    %v606 = vsel %vm539, %v585, 0.0
    %607 = vadd.xlane.f32.xlu0 %v606
    %v608 = vpop.xlane.xlu0 %607
    %v609 = vsel %vm539, %v587, 0.0
    %610 = vadd.xlane.f32.xlu0 %v609
    %v611 = vpop.xlane.xlu0 %610
    %612 = vrot.lane.b32.xlu0 %v166, 64
    %v613 = vpop.permute.xlu0 %612
    %614 = vrot.lane.b32.xlu0 %v171, 64
    %v615 = vpop.permute.xlu0 %614
    %v619 = vsel %vm539, %v573, 0
    %v622 = vsel %vm539, %v575, 0
    %624 = vmatprep.subr.mxu0 0.0
    %625 = vmatpush1.msra.mxu0 0.0
    %626 = vmatprep.subr.mxu0 0.0
    %627 = vmatpush1.msra.mxu0 0.0
    %628 = vmatprep.subr.mxu0 0.0
    %629 = vmatpush1.msra.mxu0 0.0
    %630 = vmatprep.subr.mxu0 0.0
    %631 = vmatpush1.msra.mxu0 0.0
    %632 = vmatprep.subr.mxu0 0.0
    %633 = vmatpush1.msra.mxu0 0.0
    %634 = vmatprep.subr.mxu0 0.0
    %635 = vmatpush1.msra.mxu0 0.0
    %636 = vmatprep.subr.mxu0 0.0
    %637 = vmatpush1.msra.mxu0 0.0
    %638 = vmatprep.subr.mxu0 0.0
    %639 = vmatpush1.msra.mxu0 0.0
    %640 = vmatprep.subr.mxu0 0.0
    %641 = vmatpush1.msra.mxu0 0.0
    %642 = vmatprep.subr.mxu0 0.0
    %643 = vmatpush1.msra.mxu0 0.0
    %644 = vmatprep.subr.mxu0 0.0
    %645 = vmatpush1.msra.mxu0 0.0
    %646 = vmatprep.subr.mxu0 0.0
    %647 = vmatpush1.msra.mxu0 0.0
    %648 = vmatprep.subr.mxu0 0.0
    %649 = vmatpush1.msra.mxu0 0.0
    %650 = vmatprep.subr.mxu0 0.0
    %651 = vmatpush1.msra.mxu0 0.0
    %652 = vmatprep.subr.mxu0 0.0
    %653 = vmatpush1.msra.mxu0 %v615
    %654 = vmatprep.subr.mxu0 0.0
    %655 = vmatpush1.msra.mxu0 %v613
    %656 = vmatprep.subr.mxu0 0.0
    %657 = vmatpush2.msra.mxu0 0.0
    %658 = vmatprep.subr.mxu0 0.0
    %659 = vmatpush2.msra.mxu0 0.0
    %660 = vmatprep.subr.mxu0 0.0
    %661 = vmatpush2.msra.mxu0 0.0
    %662 = vmatprep.subr.mxu0 0.0
    %663 = vmatpush2.msra.mxu0 0.0
    %664 = vmatprep.subr.mxu0 0.0
    %665 = vmatpush2.msra.mxu0 0.0
    %666 = vmatprep.subr.mxu0 0.0
    %667 = vmatpush2.msra.mxu0 0.0
    %668 = vmatprep.subr.mxu0 0.0
    %669 = vmatpush2.msra.mxu0 0.0
    %670 = vmatprep.subr.mxu0 0.0
    %671 = vmatpush2.msra.mxu0 0.0
    %672 = vmatprep.subr.mxu0 0.0
    %673 = vmatpush2.msra.mxu0 0.0
    %674 = vmatprep.subr.mxu0 0.0
    %675 = vmatpush2.msra.mxu0 0.0
    %676 = vmatprep.subr.mxu0 0.0
    %677 = vmatpush2.msra.mxu0 0.0
    %678 = vmatprep.subr.mxu0 0.0
    %679 = vmatpush2.msra.mxu0 0.0
    %680 = vmatprep.subr.mxu0 0.0
    %681 = vmatpush2.msra.mxu0 0.0
    %682 = vmatprep.subr.mxu0 0.0
    %683 = vmatpush2.msra.mxu0 0.0
    %684 = vmatprep.subr.mxu0 0.0
    %685 = vmatpush2.msra.mxu0 0.0
    %686 = vmatprep.subr.mxu0 0.0
    %687 = vmatpush2.msra.mxu0 0.0
    %688 = vmatprep.mubr.f32.mxu0 0.0
    %689 = vmatmul.mubr.f32.gmra.mxu0 %v619
    %v690 = vpop.f32.mrf.mxu0
    %v691 = vadd.f32 0.0, %v690
    %v692 = vpop.f32.mrf.mxu0
    %693 = vmatprep.mubr.f32.mxu0 0.0
    %694 = vmatmul.mubr.f32.gmra.mxu0 %v622
    %v695 = vpop.f32.mrf.mxu0
    %v696 = vadd.f32 0.0, %v695
    %v697 = vpop.f32.mrf.mxu0
    %698 = vdwg.mxu0
    %699 = vrot.lane.b32.xlu0 %v177, 64
    %v700 = vpop.permute.xlu0 %699
    %701 = vrot.lane.b32.xlu0 %v179, 64
    %v702 = vpop.permute.xlu0 %701
    %v706 = vsel %vm539, %v577, 0
    %v709 = vsel %vm539, %v579, 0
    %711 = vmatprep.subr.mxu0 0.0
    %712 = vmatpush1.msra.mxu0 0.0
    %713 = vmatprep.subr.mxu0 0.0
    %714 = vmatpush1.msra.mxu0 0.0
    %715 = vmatprep.subr.mxu0 0.0
    %716 = vmatpush1.msra.mxu0 0.0
    %717 = vmatprep.subr.mxu0 0.0
    %718 = vmatpush1.msra.mxu0 0.0
    %719 = vmatprep.subr.mxu0 0.0
    %720 = vmatpush1.msra.mxu0 0.0
    %721 = vmatprep.subr.mxu0 0.0
    %722 = vmatpush1.msra.mxu0 0.0
    %723 = vmatprep.subr.mxu0 0.0
    %724 = vmatpush1.msra.mxu0 0.0
    %725 = vmatprep.subr.mxu0 0.0
    %726 = vmatpush1.msra.mxu0 0.0
    %727 = vmatprep.subr.mxu0 0.0
    %728 = vmatpush1.msra.mxu0 0.0
    %729 = vmatprep.subr.mxu0 0.0
    %730 = vmatpush1.msra.mxu0 0.0
    %731 = vmatprep.subr.mxu0 0.0
    %732 = vmatpush1.msra.mxu0 0.0
    %733 = vmatprep.subr.mxu0 0.0
    %734 = vmatpush1.msra.mxu0 0.0
    %735 = vmatprep.subr.mxu0 0.0
    %736 = vmatpush1.msra.mxu0 0.0
    %737 = vmatprep.subr.mxu0 0.0
    %738 = vmatpush1.msra.mxu0 0.0
    %739 = vmatprep.subr.mxu0 0.0
    %740 = vmatpush1.msra.mxu0 %v702
    %741 = vmatprep.subr.mxu0 0.0
    %742 = vmatpush1.msra.mxu0 %v700
    %743 = vmatprep.subr.mxu0 0.0
    %744 = vmatpush2.msra.mxu0 0.0
    %745 = vmatprep.subr.mxu0 0.0
    %746 = vmatpush2.msra.mxu0 0.0
    %747 = vmatprep.subr.mxu0 0.0
    %748 = vmatpush2.msra.mxu0 0.0
    %749 = vmatprep.subr.mxu0 0.0
    %750 = vmatpush2.msra.mxu0 0.0
    %751 = vmatprep.subr.mxu0 0.0
    %752 = vmatpush2.msra.mxu0 0.0
    %753 = vmatprep.subr.mxu0 0.0
    %754 = vmatpush2.msra.mxu0 0.0
    %755 = vmatprep.subr.mxu0 0.0
    %756 = vmatpush2.msra.mxu0 0.0
    %757 = vmatprep.subr.mxu0 0.0
    %758 = vmatpush2.msra.mxu0 0.0
    %759 = vmatprep.subr.mxu0 0.0
    %760 = vmatpush2.msra.mxu0 0.0
    %761 = vmatprep.subr.mxu0 0.0
    %762 = vmatpush2.msra.mxu0 0.0
    %763 = vmatprep.subr.mxu0 0.0
    %764 = vmatpush2.msra.mxu0 0.0
    %765 = vmatprep.subr.mxu0 0.0
    %766 = vmatpush2.msra.mxu0 0.0
    %767 = vmatprep.subr.mxu0 0.0
    %768 = vmatpush2.msra.mxu0 0.0
    %769 = vmatprep.subr.mxu0 0.0
    %770 = vmatpush2.msra.mxu0 0.0
    %771 = vmatprep.subr.mxu0 0.0
    %772 = vmatpush2.msra.mxu0 0.0
    %773 = vmatprep.subr.mxu0 0.0
    %774 = vmatpush2.msra.mxu0 0.0
    %775 = vmatprep.mubr.f32.mxu0 0.0
    %776 = vmatmul.mubr.f32.gmra.mxu0 %v706
    %v777 = vpop.f32.mrf.mxu0
    %v778 = vadd.f32 0.0, %v777
    %v779 = vpop.f32.mrf.mxu0
    %780 = vmatprep.mubr.f32.mxu0 0.0
    %781 = vmatmul.mubr.f32.gmra.mxu0 %v709
    %v782 = vpop.f32.mrf.mxu0
    %v783 = vadd.f32 0.0, %v782
    %v784 = vpop.f32.mrf.mxu0
    %785 = vdwg.mxu0
    %786 = vrot.lane.b32.xlu0 %v181, 64
    %v787 = vpop.permute.xlu0 %786
    %788 = vrot.lane.b32.xlu0 %v183, 64
    %v789 = vpop.permute.xlu0 %788
    %v793 = vsel %vm539, %v581, 0
    %v796 = vsel %vm539, %v583, 0
    %798 = vmatprep.subr.mxu0 0.0
    %799 = vmatpush1.msra.mxu0 0.0
    %800 = vmatprep.subr.mxu0 0.0
    %801 = vmatpush1.msra.mxu0 0.0
    %802 = vmatprep.subr.mxu0 0.0
    %803 = vmatpush1.msra.mxu0 0.0
    %804 = vmatprep.subr.mxu0 0.0
    %805 = vmatpush1.msra.mxu0 0.0
    %806 = vmatprep.subr.mxu0 0.0
    %807 = vmatpush1.msra.mxu0 0.0
    %808 = vmatprep.subr.mxu0 0.0
    %809 = vmatpush1.msra.mxu0 0.0
    %810 = vmatprep.subr.mxu0 0.0
    %811 = vmatpush1.msra.mxu0 0.0
    %812 = vmatprep.subr.mxu0 0.0
    %813 = vmatpush1.msra.mxu0 0.0
    %814 = vmatprep.subr.mxu0 0.0
    %815 = vmatpush1.msra.mxu0 0.0
    %816 = vmatprep.subr.mxu0 0.0
    %817 = vmatpush1.msra.mxu0 0.0
    %818 = vmatprep.subr.mxu0 0.0
    %819 = vmatpush1.msra.mxu0 0.0
    %820 = vmatprep.subr.mxu0 0.0
    %821 = vmatpush1.msra.mxu0 0.0
    %822 = vmatprep.subr.mxu0 0.0
    %823 = vmatpush1.msra.mxu0 0.0
    %824 = vmatprep.subr.mxu0 0.0
    %825 = vmatpush1.msra.mxu0 0.0
    %826 = vmatprep.subr.mxu0 0.0
    %827 = vmatpush1.msra.mxu0 %v789
    %828 = vmatprep.subr.mxu0 0.0
    %829 = vmatpush1.msra.mxu0 %v787
    %830 = vmatprep.subr.mxu0 0.0
    %831 = vmatpush2.msra.mxu0 0.0
    %832 = vmatprep.subr.mxu0 0.0
    %833 = vmatpush2.msra.mxu0 0.0
    %834 = vmatprep.subr.mxu0 0.0
    %835 = vmatpush2.msra.mxu0 0.0
    %836 = vmatprep.subr.mxu0 0.0
    %837 = vmatpush2.msra.mxu0 0.0
    %838 = vmatprep.subr.mxu0 0.0
    %839 = vmatpush2.msra.mxu0 0.0
    %840 = vmatprep.subr.mxu0 0.0
    %841 = vmatpush2.msra.mxu0 0.0
    %842 = vmatprep.subr.mxu0 0.0
    %843 = vmatpush2.msra.mxu0 0.0
    %844 = vmatprep.subr.mxu0 0.0
    %845 = vmatpush2.msra.mxu0 0.0
    %846 = vmatprep.subr.mxu0 0.0
    %847 = vmatpush2.msra.mxu0 0.0
    %848 = vmatprep.subr.mxu0 0.0
    %849 = vmatpush2.msra.mxu0 0.0
    %850 = vmatprep.subr.mxu0 0.0
    %851 = vmatpush2.msra.mxu0 0.0
    %852 = vmatprep.subr.mxu0 0.0
    %853 = vmatpush2.msra.mxu0 0.0
    %854 = vmatprep.subr.mxu0 0.0
    %855 = vmatpush2.msra.mxu0 0.0
    %856 = vmatprep.subr.mxu0 0.0
    %857 = vmatpush2.msra.mxu0 0.0
    %858 = vmatprep.subr.mxu0 0.0
    %859 = vmatpush2.msra.mxu0 0.0
    %860 = vmatprep.subr.mxu0 0.0
    %861 = vmatpush2.msra.mxu0 0.0
    %862 = vmatprep.mubr.f32.mxu0 0.0
    %863 = vmatmul.mubr.f32.gmra.mxu0 %v793
    %v864 = vpop.f32.mrf.mxu0
    %v865 = vadd.f32 0.0, %v864
    %v866 = vpop.f32.mrf.mxu0
    %867 = vmatprep.mubr.f32.mxu0 0.0
    %868 = vmatmul.mubr.f32.gmra.mxu0 %v796
    %v869 = vpop.f32.mrf.mxu0
    %v870 = vadd.f32 0.0, %v869
    %v871 = vpop.f32.mrf.mxu0
    %872 = vdwg.mxu0
    %873 = vrot.lane.b32.xlu0 %v185, 64
    %v874 = vpop.permute.xlu0 %873
    %875 = vrot.lane.b32.xlu0 %v187, 64
    %v876 = vpop.permute.xlu0 %875
    %v880 = vsel %vm539, %v585, 0
    %v883 = vsel %vm539, %v587, 0
    %885 = vmatprep.subr.mxu0 0.0
    %886 = vmatpush1.msra.mxu0 0.0
    %887 = vmatprep.subr.mxu0 0.0
    %888 = vmatpush1.msra.mxu0 0.0
    %889 = vmatprep.subr.mxu0 0.0
    %890 = vmatpush1.msra.mxu0 0.0
    %891 = vmatprep.subr.mxu0 0.0
    %892 = vmatpush1.msra.mxu0 0.0
    %893 = vmatprep.subr.mxu0 0.0
    %894 = vmatpush1.msra.mxu0 0.0
    %895 = vmatprep.subr.mxu0 0.0
    %896 = vmatpush1.msra.mxu0 0.0
    %897 = vmatprep.subr.mxu0 0.0
    %898 = vmatpush1.msra.mxu0 0.0
    %899 = vmatprep.subr.mxu0 0.0
    %900 = vmatpush1.msra.mxu0 0.0
    %901 = vmatprep.subr.mxu0 0.0
    %902 = vmatpush1.msra.mxu0 0.0
    %903 = vmatprep.subr.mxu0 0.0
    %904 = vmatpush1.msra.mxu0 0.0
    %905 = vmatprep.subr.mxu0 0.0
    %906 = vmatpush1.msra.mxu0 0.0
    %907 = vmatprep.subr.mxu0 0.0
    %908 = vmatpush1.msra.mxu0 0.0
    %909 = vmatprep.subr.mxu0 0.0
    %910 = vmatpush1.msra.mxu0 0.0
    %911 = vmatprep.subr.mxu0 0.0
    %912 = vmatpush1.msra.mxu0 0.0
    %913 = vmatprep.subr.mxu0 0.0
    %914 = vmatpush1.msra.mxu0 %v876
    %915 = vmatprep.subr.mxu0 0.0
    %916 = vmatpush1.msra.mxu0 %v874
    %917 = vmatprep.subr.mxu0 0.0
    %918 = vmatpush2.msra.mxu0 0.0
    %919 = vmatprep.subr.mxu0 0.0
    %920 = vmatpush2.msra.mxu0 0.0
    %921 = vmatprep.subr.mxu0 0.0
    %922 = vmatpush2.msra.mxu0 0.0
    %923 = vmatprep.subr.mxu0 0.0
    %924 = vmatpush2.msra.mxu0 0.0
    %925 = vmatprep.subr.mxu0 0.0
    %926 = vmatpush2.msra.mxu0 0.0
    %927 = vmatprep.subr.mxu0 0.0
    %928 = vmatpush2.msra.mxu0 0.0
    %929 = vmatprep.subr.mxu0 0.0
    %930 = vmatpush2.msra.mxu0 0.0
    %931 = vmatprep.subr.mxu0 0.0
    %932 = vmatpush2.msra.mxu0 0.0
    %933 = vmatprep.subr.mxu0 0.0
    %934 = vmatpush2.msra.mxu0 0.0
    %935 = vmatprep.subr.mxu0 0.0
    %936 = vmatpush2.msra.mxu0 0.0
    %937 = vmatprep.subr.mxu0 0.0
    %938 = vmatpush2.msra.mxu0 0.0
    %939 = vmatprep.subr.mxu0 0.0
    %940 = vmatpush2.msra.mxu0 0.0
    %941 = vmatprep.subr.mxu0 0.0
    %942 = vmatpush2.msra.mxu0 0.0
    %943 = vmatprep.subr.mxu0 0.0
    %944 = vmatpush2.msra.mxu0 0.0
    %945 = vmatprep.subr.mxu0 0.0
    %946 = vmatpush2.msra.mxu0 0.0
    %947 = vmatprep.subr.mxu0 0.0
    %948 = vmatpush2.msra.mxu0 0.0
    %949 = vmatprep.mubr.f32.mxu0 0.0
    %950 = vmatmul.mubr.f32.gmra.mxu0 %v880
    %v951 = vpop.f32.mrf.mxu0
    %v952 = vadd.f32 0.0, %v951
    %v953 = vpop.f32.mrf.mxu0
    %954 = vmatprep.mubr.f32.mxu0 0.0
    %955 = vmatmul.mubr.f32.gmra.mxu0 %v883
    %v956 = vpop.f32.mrf.mxu0
    %v957 = vadd.f32 0.0, %v956
    %v958 = vpop.f32.mrf.mxu0
    %959 = vdwg.mxu0
    %v960 = vrcp.pop %v590
    %v961 = vmul.f32 %v691, %v960
    %v962 = vrcp.pop %v593
    %v963 = vmul.f32 %v696, %v962
    %v964 = vrcp.pop %v596
    %v965 = vmul.f32 %v778, %v964
    %v966 = vrcp.pop %v599
    %v967 = vmul.f32 %v783, %v966
    %v968 = vrcp.pop %v602
    %v969 = vmul.f32 %v865, %v968
    %v970 = vrcp.pop %v605
    %v971 = vmul.f32 %v870, %v970
    %v972 = vrcp.pop %v608
    %v973 = vmul.f32 %v952, %v972
    %v974 = vrcp.pop %v611
    %v975 = vmul.f32 %v957, %v974
    %978 = vrot.lane.b32.xlu0 %v965, 8
    %v979 = vpop.permute.xlu0 %978
    %980 = vrot.lane.b32.xlu0 %v967, 8
    %v981 = vpop.permute.xlu0 %980
    %986 = vrot.lane.b32.xlu0 %v969, 16
    %v987 = vpop.permute.xlu0 %986
    %988 = vrot.lane.b32.xlu0 %v971, 16
    %v989 = vpop.permute.xlu0 %988
    %994 = vrot.lane.b32.xlu0 %v973, 24
    %v995 = vpop.permute.xlu0 %994
    %996 = vrot.lane.b32.xlu0 %v975, 24
    %v997 = vpop.permute.xlu0 %996
    %v1000 = vsel %vm194, %v961, %v979
    %v1001 = vsel %vm194, %v963, %v981
    %v1002 = vsel %vm539, %v1000, %v987
    %v1003 = vsel %vm539, %v1001, %v989
    %vm1004 = vcmask 195584
    %v1005 = vsel %vm1004, %v1002, %v995
    %v1006 = vsel %vm1004, %v1003, %v997
    %v1007 = vld [vmem:[#allocation8] sm:$0xff]
    %v1008 = vld [vmem:[#allocation8 + $0x8] sm:$0xff]
    %v1009 = vld [vmem:[#allocation8 + $0x10] sm:$0xff]
    %v1010 = vld [vmem:[#allocation8 + $0x18] sm:$0xff]
    %v1011 = vld [vmem:[%s5] sm:$0x1]
    %v1013 = vlaneseq
    %v1014 = vshrl.u32 %v1013, 7
    %v1015 = vsub.s32 0, %v1014
    %v1016 = vrot.slane %v1011, %v1015
    %v1019 = vsel %vm92, %v1005, 0
    %v1022 = vsel %vm92, %v1006, 0
    %1024 = vmatprep.subr.mxu0 0.0
    %1025 = vmatpush1.msra.mxu0 0.0
    %1026 = vmatprep.subr.mxu0 0.0
    %1027 = vmatpush1.msra.mxu0 0.0
    %1028 = vmatprep.subr.mxu0 0.0
    %1029 = vmatpush1.msra.mxu0 0.0
    %1030 = vmatprep.subr.mxu0 0.0
    %1031 = vmatpush1.msra.mxu0 0.0
    %1032 = vmatprep.subr.mxu0 0.0
    %1033 = vmatpush1.msra.mxu0 0.0
    %1034 = vmatprep.subr.mxu0 0.0
    %1035 = vmatpush1.msra.mxu0 0.0
    %1036 = vmatprep.subr.mxu0 0.0
    %1037 = vmatpush1.msra.mxu0 0.0
    %1038 = vmatprep.subr.mxu0 0.0
    %1039 = vmatpush1.msra.mxu0 0.0
    %1040 = vmatprep.subr.mxu0 0.0
    %1041 = vmatpush1.msra.mxu0 0.0
    %1042 = vmatprep.subr.mxu0 0.0
    %1043 = vmatpush1.msra.mxu0 0.0
    %1044 = vmatprep.subr.mxu0 0.0
    %1045 = vmatpush1.msra.mxu0 0.0
    %1046 = vmatprep.subr.mxu0 0.0
    %1047 = vmatpush1.msra.mxu0 0.0
    %1048 = vmatprep.subr.mxu0 0.0
    %1049 = vmatpush1.msra.mxu0 %v1010
    %1050 = vmatprep.subr.mxu0 0.0
    %1051 = vmatpush1.msra.mxu0 %v1009
    %1052 = vmatprep.subr.mxu0 0.0
    %1053 = vmatpush1.msra.mxu0 %v1008
    %1054 = vmatprep.subr.mxu0 0.0
    %1055 = vmatpush1.msra.mxu0 %v1007
    %1056 = vmatprep.subr.mxu0 0.0
    %1057 = vmatpush2.msra.mxu0 0.0
    %1058 = vmatprep.subr.mxu0 0.0
    %1059 = vmatpush2.msra.mxu0 0.0
    %1060 = vmatprep.subr.mxu0 0.0
    %1061 = vmatpush2.msra.mxu0 0.0
    %1062 = vmatprep.subr.mxu0 0.0
    %1063 = vmatpush2.msra.mxu0 0.0
    %1064 = vmatprep.subr.mxu0 0.0
    %1065 = vmatpush2.msra.mxu0 0.0
    %1066 = vmatprep.subr.mxu0 0.0
    %1067 = vmatpush2.msra.mxu0 0.0
    %1068 = vmatprep.subr.mxu0 0.0
    %1069 = vmatpush2.msra.mxu0 0.0
    %1070 = vmatprep.subr.mxu0 0.0
    %1071 = vmatpush2.msra.mxu0 0.0
    %1072 = vmatprep.subr.mxu0 0.0
    %1073 = vmatpush2.msra.mxu0 0.0
    %1074 = vmatprep.subr.mxu0 0.0
    %1075 = vmatpush2.msra.mxu0 0.0
    %1076 = vmatprep.subr.mxu0 0.0
    %1077 = vmatpush2.msra.mxu0 0.0
    %1078 = vmatprep.subr.mxu0 0.0
    %1079 = vmatpush2.msra.mxu0 0.0
    %1080 = vmatprep.subr.mxu0 0.0
    %1081 = vmatpush2.msra.mxu0 0.0
    %1082 = vmatprep.subr.mxu0 0.0
    %1083 = vmatpush2.msra.mxu0 0.0
    %1084 = vmatprep.subr.mxu0 0.0
    %1085 = vmatpush2.msra.mxu0 0.0
    %1086 = vmatprep.subr.mxu0 0.0
    %1087 = vmatpush2.msra.mxu0 0.0
    %1088 = vmatprep.mubr.f32.mxu0 0.0
    %1089 = vmatmul.mubr.f32.gmra.mxu0 %v1019
    %v1090 = vpop.f32.mrf.mxu0
    %v1091 = vadd.f32 %v1016, %v1090
    %v1092 = vpop.f32.mrf.mxu0
    %1093 = vmatprep.mubr.f32.mxu0 0.0
    %1094 = vmatmul.mubr.f32.gmra.mxu0 %v1022
    %v1095 = vpop.f32.mrf.mxu0
    %v1096 = vadd.f32 %v1016, %v1095
    %v1097 = vpop.f32.mrf.mxu0
    %1098 = vdwg.mxu0
    %1099 = vst.msk [vmem:[#allocation10] sm:$0xff] %vm92, %v1091
    %1100 = vst.msk [vmem:[#allocation10 + $0x8] sm:$0xff] %vm92, %v1096
    // Predicated region
    $region42: #{tpu_custom_call.1} parent=1 // pred_check
      _
    $region43: #{tpu_custom_call.1} parent=1 // pred_check_branch
      %1102 = sbr.rel (0) target = $region45
    $region44: #{tpu_custom_call.1} parent=1 // pred_region
      %s1104 = ssub.s32 256, 256
      %1105 = vsyncadd [#allocation4], %s1104
      %s1106 = sshll.u32 [#allocation10], 4
      %s1107 = int_to_ptr.vmem [resolvable:$true] %s1106
      %1112 = dma.vmem_to_hbm [thread:$0]  %s1107, 256, %s6, [#allocation4], 128, 128, 8
    $region45: #{tpu_custom_call.1} parent=1 // pred_fallthru
      _
    // Predicated region
    $region46: #{tpu_custom_call.1} parent=1 // pred_check
      _
    $region47: #{tpu_custom_call.1} parent=1 // pred_check_branch
      %1114 = sbr.rel (0) target = $region49
    $region48: #{tpu_custom_call.1} parent=1 // pred_region
      %1115 = dma.done [#allocation4], 256
    $region49: #{tpu_custom_call.1} parent=1 // pred_fallthru
      _
    %1116 = vsyncpa [#allocation3], 1
    %1117 = vsyncpa [#allocation6], 1
    %1118 = vsyncpa [#allocation9], 1
    %1119 = vsyncpa [#allocation4], 1

// kernel: tpu_custom_call.1
$region0: #{tpu_custom_call.1}
  #allocation0 [shape = 'u32[]', space=smem, size = 0x4, offset = 0x4, fixed_abs, tag = 'smem constant byte address 0x4 - core index']
  #allocation1 [shape = 'u32[144,128]{1,0:T(1,128)}', space=vmem, size = 0x12000, scoped, tag = 'internal scratch']
  %s0 = inlined_call_operand.hbm [shape: f32[16,32], index: 0, kind: input, shape index: {}]
  %s1 = inlined_call_operand.hbm [shape: f32[16,16], index: 1, kind: input, shape index: {}]
  %s2 = inlined_call_operand.hbm [shape: f32[32,96], index: 2, kind: input, shape index: {}]
  %s3 = inlined_call_operand.vmem [shape: f32[1,96], index: 3, kind: input, shape index: {}]
  %s4 = inlined_call_operand.hbm [shape: f32[32,32], index: 4, kind: input, shape index: {}]
  %s5 = inlined_call_operand.vmem [shape: f32[1,32], index: 5, kind: input, shape index: {}]
  %s6 = inlined_call_operand.hbm [shape: f32[16,32], index: 6, kind: output, shape index: {}]
  %s7 = sld [smem:[#allocation0]]
  $region50: #{tpu_custom_call.1} parent=0
    _
  %s9 = ssub.s32 1, %s7
  %s10 = scalar_select 0, %s9, %s7
  $region1: #{tpu_custom_call.1} parent=0
    #allocation2 [shape = 'u8[8192]{0}', space=vmem, size = 0x2000, scoped, tag = 'input window, operand 0, single buffered']
    #allocation3 [shape = 's32[1]{0}', space=sflag, size = 0x4, scoped, tag = 'scoped memory for tpu_custom_call.1']
    #allocation4 [shape = 's32[1]{0}', space=sflag, size = 0x4, scoped, tag = 'scoped memory for tpu_custom_call.1']
    #allocation5 [shape = 'u8[8192]{0}', space=vmem, size = 0x2000, scoped, tag = 'input window, operand 1, single buffered']
    #allocation6 [shape = 's32[1]{0}', space=sflag, size = 0x4, scoped, tag = 'scoped memory for tpu_custom_call.1']
    #allocation7 [shape = 'u8[16384]{0}', space=vmem, size = 0x4000, scoped, tag = 'input window, operand 2, single buffered']
    #allocation8 [shape = 'u8[16384]{0}', space=vmem, size = 0x4000, scoped, tag = 'input window, operand 4, single buffered']
    #allocation9 [shape = 's32[1]{0}', space=sflag, size = 0x4, scoped, tag = 'scoped memory for tpu_custom_call.1']
    #allocation10 [shape = 'u8[8192]{0}', space=vmem, size = 0x2000, scoped, tag = 'output window, operand 0, single buffered']
    %11 = vsyncpa [#allocation3], 0
    %12 = vsyncpa [#allocation6], 0
    %13 = vsyncpa [#allocation9], 0
    %14 = vsyncpa [#allocation4], 0
    // Predicated region
    $region2: #{tpu_custom_call.1} parent=1 // pred_check
      _
    $region3: #{tpu_custom_call.1} parent=1 // pred_check_branch
      %16 = sbr.rel (0) target = $region5
    $region4: #{tpu_custom_call.1} parent=1 // pred_region
      %s18 = ssub.s32 256, 256
      %19 = vsyncadd [#allocation3], %s18
      %s20 = sshll.u32 [#allocation2], 4
      %s21 = int_to_ptr.vmem [resolvable:$true] %s20
      %26 = dma.hbm_to_vmem [thread:$0]  %s0, 256, %s21, [#allocation3], 128, 128, 8
    $region5: #{tpu_custom_call.1} parent=1 // pred_fallthru
      _
    // Predicated region
    $region6: #{tpu_custom_call.1} parent=1 // pred_check
      _
    $region7: #{tpu_custom_call.1} parent=1 // pred_check_branch
      %28 = sbr.rel (0) target = $region9
    $region8: #{tpu_custom_call.1} parent=1 // pred_region
      %s30 = ssub.s32 256, 256
      %31 = vsyncadd [#allocation6], %s30
      %s32 = sshll.u32 [#allocation5], 4
      %s33 = int_to_ptr.vmem [resolvable:$true] %s32
      %38 = dma.hbm_to_vmem [thread:$0]  %s1, 256, %s33, [#allocation6], 128, 128, 8
    $region9: #{tpu_custom_call.1} parent=1 // pred_fallthru
      _
    // Predicated region
    $region10: #{tpu_custom_call.1} parent=1 // pred_check
      _
    $region11: #{tpu_custom_call.1} parent=1 // pred_check_branch
      %40 = sbr.rel (0) target = $region13
    $region12: #{tpu_custom_call.1} parent=1 // pred_region
      %s42 = ssub.s32 512, 512
      %43 = vsyncadd [#allocation6], %s42
      %s44 = sshll.u32 [#allocation7], 4
      %s45 = int_to_ptr.vmem [resolvable:$true] %s44
      %50 = dma.hbm_to_vmem [thread:$0]  %s2, 512, %s45, [#allocation6], 128, 128, 8
    $region13: #{tpu_custom_call.1} parent=1 // pred_fallthru
      _
    // Predicated region
    $region14: #{tpu_custom_call.1} parent=1 // pred_check
      _
    $region15: #{tpu_custom_call.1} parent=1 // pred_check_branch
      %52 = sbr.rel (0) target = $region17
    $region16: #{tpu_custom_call.1} parent=1 // pred_region
      _
    $region17: #{tpu_custom_call.1} parent=1 // pred_fallthru
      _
    // Predicated region
    $region18: #{tpu_custom_call.1} parent=1 // pred_check
      _
    $region19: #{tpu_custom_call.1} parent=1 // pred_check_branch
      %54 = sbr.rel (0) target = $region21
    $region20: #{tpu_custom_call.1} parent=1 // pred_region
      %s56 = ssub.s32 512, 512
      %57 = vsyncadd [#allocation9], %s56
      %s58 = sshll.u32 [#allocation8], 4
      %s59 = int_to_ptr.vmem [resolvable:$true] %s58
      %64 = dma.hbm_to_vmem [thread:$0]  %s4, 512, %s59, [#allocation9], 128, 128, 8
    $region21: #{tpu_custom_call.1} parent=1 // pred_fallthru
      _
    // Predicated region
    $region22: #{tpu_custom_call.1} parent=1 // pred_check
      _
    $region23: #{tpu_custom_call.1} parent=1 // pred_check_branch
      %66 = sbr.rel (0) target = $region25
    $region24: #{tpu_custom_call.1} parent=1 // pred_region
      _
    $region25: #{tpu_custom_call.1} parent=1 // pred_fallthru
      _
    // Predicated region
    $region26: #{tpu_custom_call.1} parent=1 // pred_check
      _
    $region27: #{tpu_custom_call.1} parent=1 // pred_check_branch
      %68 = sbr.rel (0) target = $region29
    $region28: #{tpu_custom_call.1} parent=1 // pred_region
      %69 = dma.done [#allocation3], 256
    $region29: #{tpu_custom_call.1} parent=1 // pred_fallthru
      _
    // Predicated region
    $region30: #{tpu_custom_call.1} parent=1 // pred_check
      _
    $region31: #{tpu_custom_call.1} parent=1 // pred_check_branch
      %71 = sbr.rel (0) target = $region33
    $region32: #{tpu_custom_call.1} parent=1 // pred_region
      %72 = dma.done [#allocation6], 256
    $region33: #{tpu_custom_call.1} parent=1 // pred_fallthru
      _
    // Predicated region
    $region34: #{tpu_custom_call.1} parent=1 // pred_check
      _
    $region35: #{tpu_custom_call.1} parent=1 // pred_check_branch
      %74 = sbr.rel (0) target = $region37
    $region36: #{tpu_custom_call.1} parent=1 // pred_region
      %75 = dma.done [#allocation6], 512
    $region37: #{tpu_custom_call.1} parent=1 // pred_fallthru
      _
    // Predicated region
    $region38: #{tpu_custom_call.1} parent=1 // pred_check
      _
    $region39: #{tpu_custom_call.1} parent=1 // pred_check_branch
      %77 = sbr.rel (0) target = $region41
    $region40: #{tpu_custom_call.1} parent=1 // pred_region
      %78 = dma.done [#allocation9], 512
    $region41: #{tpu_custom_call.1} parent=1 // pred_fallthru
      _
    %v79 = vld [vmem:[#allocation2] sm:$0xff]
    %v80 = vld [vmem:[#allocation2 + $0x8] sm:$0xff]
    %v81 = vld [vmem:[#allocation7] sm:$0xff]
    %v82 = vld [vmem:[#allocation7 + $0x8] sm:$0xff]
    %v83 = vld [vmem:[#allocation7 + $0x10] sm:$0xff]
    %v84 = vld [vmem:[#allocation7 + $0x18] sm:$0xff]
    %v85 = vld [vmem:[%s3] sm:$0x1]
    %v87 = vlaneseq
    %v88 = vshrl.u32 %v87, 7
    %v89 = vsub.s32 0, %v88
    %v90 = vrot.slane %v85, %v89
    %vm92 = vcmask 261120
    %v94 = vsel %vm92, %v79, 0
    %v97 = vsel %vm92, %v80, 0
    %99 = vmatprep.subr.mxu0 0.0
    %100 = vmatpush1.msra.mxu0 0.0
    %101 = vmatprep.subr.mxu0 0.0
    %102 = vmatpush1.msra.mxu0 0.0
    %103 = vmatprep.subr.mxu0 0.0
    %104 = vmatpush1.msra.mxu0 0.0
    %105 = vmatprep.subr.mxu0 0.0
    %106 = vmatpush1.msra.mxu0 0.0
    %107 = vmatprep.subr.mxu0 0.0
    %108 = vmatpush1.msra.mxu0 0.0
    %109 = vmatprep.subr.mxu0 0.0
    %110 = vmatpush1.msra.mxu0 0.0
    %111 = vmatprep.subr.mxu0 0.0
    %112 = vmatpush1.msra.mxu0 0.0
    %113 = vmatprep.subr.mxu0 0.0
    %114 = vmatpush1.msra.mxu0 0.0
    %115 = vmatprep.subr.mxu0 0.0
    %116 = vmatpush1.msra.mxu0 0.0
    %117 = vmatprep.subr.mxu0 0.0
    %118 = vmatpush1.msra.mxu0 0.0
    %119 = vmatprep.subr.mxu0 0.0
    %120 = vmatpush1.msra.mxu0 0.0
    %121 = vmatprep.subr.mxu0 0.0
    %122 = vmatpush1.msra.mxu0 0.0
    %123 = vmatprep.subr.mxu0 0.0
    %124 = vmatpush1.msra.mxu0 %v84
    %125 = vmatprep.subr.mxu0 0.0
    %126 = vmatpush1.msra.mxu0 %v83
    %127 = vmatprep.subr.mxu0 0.0
    %128 = vmatpush1.msra.mxu0 %v82
    %129 = vmatprep.subr.mxu0 0.0
    %130 = vmatpush1.msra.mxu0 %v81
    %131 = vmatprep.subr.mxu0 0.0
    %132 = vmatpush2.msra.mxu0 0.0
    %133 = vmatprep.subr.mxu0 0.0
    %134 = vmatpush2.msra.mxu0 0.0
    %135 = vmatprep.subr.mxu0 0.0
    %136 = vmatpush2.msra.mxu0 0.0
    %137 = vmatprep.subr.mxu0 0.0
    %138 = vmatpush2.msra.mxu0 0.0
    %139 = vmatprep.subr.mxu0 0.0
    %140 = vmatpush2.msra.mxu0 0.0
    %141 = vmatprep.subr.mxu0 0.0
    %142 = vmatpush2.msra.mxu0 0.0
    %143 = vmatprep.subr.mxu0 0.0
    %144 = vmatpush2.msra.mxu0 0.0
    %145 = vmatprep.subr.mxu0 0.0
    %146 = vmatpush2.msra.mxu0 0.0
    %147 = vmatprep.subr.mxu0 0.0
    %148 = vmatpush2.msra.mxu0 0.0
    %149 = vmatprep.subr.mxu0 0.0
    %150 = vmatpush2.msra.mxu0 0.0
    %151 = vmatprep.subr.mxu0 0.0
    %152 = vmatpush2.msra.mxu0 0.0
    %153 = vmatprep.subr.mxu0 0.0
    %154 = vmatpush2.msra.mxu0 0.0
    %155 = vmatprep.subr.mxu0 0.0
    %156 = vmatpush2.msra.mxu0 0.0
    %157 = vmatprep.subr.mxu0 0.0
    %158 = vmatpush2.msra.mxu0 0.0
    %159 = vmatprep.subr.mxu0 0.0
    %160 = vmatpush2.msra.mxu0 0.0
    %161 = vmatprep.subr.mxu0 0.0
    %162 = vmatpush2.msra.mxu0 0.0
    %163 = vmatprep.mubr.f32.mxu0 0.0
    %164 = vmatmul.mubr.f32.gmra.mxu0 %v94
    %v165 = vpop.f32.mrf.mxu0
    %v166 = vadd.f32 %v90, %v165
    %v167 = vpop.f32.mrf.mxu0
    %168 = vmatprep.mubr.f32.mxu0 0.0
    %169 = vmatmul.mubr.f32.gmra.mxu0 %v97
    %v170 = vpop.f32.mrf.mxu0
    %v171 = vadd.f32 %v90, %v170
    %v172 = vpop.f32.mrf.mxu0
    %173 = vdwg.mxu0
    %176 = vrot.lane.b32.xlu0 %v166, 120
    %v177 = vpop.permute.xlu0 %176
    %178 = vrot.lane.b32.xlu0 %v171, 120
    %v179 = vpop.permute.xlu0 %178
    %180 = vrot.lane.b32.xlu0 %v166, 112
    %v181 = vpop.permute.xlu0 %180
    %182 = vrot.lane.b32.xlu0 %v171, 112
    %v183 = vpop.permute.xlu0 %182
    %184 = vrot.lane.b32.xlu0 %v166, 104
    %v185 = vpop.permute.xlu0 %184
    %186 = vrot.lane.b32.xlu0 %v171, 104
    %v187 = vpop.permute.xlu0 %186
    %v188 = vld [vmem:[#allocation5] sm:$0xff]
    %v189 = vld [vmem:[#allocation5 + $0x8] sm:$0xff]
    %190 = vrot.lane.b32.xlu0 %v166, 96
    %v191 = vpop.permute.xlu0 %190
    %192 = vrot.lane.b32.xlu0 %v171, 96
    %v193 = vpop.permute.xlu0 %192
    %vm194 = vcmask 64512
    %v195 = vsel %vm194, %v166, 0
    %v197 = vsel %vm194, %v171, 0
    %v199 = vsel %vm194, %v191, 0
    %v201 = vsel %vm194, %v193, 0
    %203 = vmatprep.subr.mxu0 0.0
    %204 = vmatpush1.xpose.msra.mxu0 0.0
    %205 = vmatprep.subr.mxu0 0.0
    %206 = vmatpush1.xpose.msra.mxu0 0.0
    %207 = vmatprep.subr.mxu0 0.0
    %208 = vmatpush1.xpose.msra.mxu0 0.0
    %209 = vmatprep.subr.mxu0 0.0
    %210 = vmatpush1.xpose.msra.mxu0 0.0
    %211 = vmatprep.subr.mxu0 0.0
    %212 = vmatpush1.xpose.msra.mxu0 0.0
    %213 = vmatprep.subr.mxu0 0.0
    %214 = vmatpush1.xpose.msra.mxu0 0.0
    %215 = vmatprep.subr.mxu0 0.0
    %216 = vmatpush1.xpose.msra.mxu0 0.0
    %217 = vmatprep.subr.mxu0 0.0
    %218 = vmatpush1.xpose.msra.mxu0 0.0
    %219 = vmatprep.subr.mxu0 0.0
    %220 = vmatpush1.xpose.msra.mxu0 0.0
    %221 = vmatprep.subr.mxu0 0.0
    %222 = vmatpush1.xpose.msra.mxu0 0.0
    %223 = vmatprep.subr.mxu0 0.0
    %224 = vmatpush1.xpose.msra.mxu0 0.0
    %225 = vmatprep.subr.mxu0 0.0
    %226 = vmatpush1.xpose.msra.mxu0 0.0
    %227 = vmatprep.subr.mxu0 0.0
    %228 = vmatpush1.xpose.msra.mxu0 0.0
    %229 = vmatprep.subr.mxu0 0.0
    %230 = vmatpush1.xpose.msra.mxu0 0.0
    %231 = vmatprep.subr.mxu0 0.0
    %232 = vmatpush1.xpose.msra.mxu0 %v201
    %233 = vmatprep.subr.mxu0 0.0
    %234 = vmatpush1.xpose.msra.mxu0 %v199
    %235 = vmatprep.subr.mxu0 0.0
    %236 = vmatpush2.xpose.msra.mxu0 0.0
    %237 = vmatprep.subr.mxu0 0.0
    %238 = vmatpush2.xpose.msra.mxu0 0.0
    %239 = vmatprep.subr.mxu0 0.0
    %240 = vmatpush2.xpose.msra.mxu0 0.0
    %241 = vmatprep.subr.mxu0 0.0
    %242 = vmatpush2.xpose.msra.mxu0 0.0
    %243 = vmatprep.subr.mxu0 0.0
    %244 = vmatpush2.xpose.msra.mxu0 0.0
    %245 = vmatprep.subr.mxu0 0.0
    %246 = vmatpush2.xpose.msra.mxu0 0.0
    %247 = vmatprep.subr.mxu0 0.0
    %248 = vmatpush2.xpose.msra.mxu0 0.0
    %249 = vmatprep.subr.mxu0 0.0
    %250 = vmatpush2.xpose.msra.mxu0 0.0
    %251 = vmatprep.subr.mxu0 0.0
    %252 = vmatpush2.xpose.msra.mxu0 0.0
    %253 = vmatprep.subr.mxu0 0.0
    %254 = vmatpush2.xpose.msra.mxu0 0.0
    %255 = vmatprep.subr.mxu0 0.0
    %256 = vmatpush2.xpose.msra.mxu0 0.0
    %257 = vmatprep.subr.mxu0 0.0
    %258 = vmatpush2.xpose.msra.mxu0 0.0
    %259 = vmatprep.subr.mxu0 0.0
    %260 = vmatpush2.xpose.msra.mxu0 0.0
    %261 = vmatprep.subr.mxu0 0.0
    %262 = vmatpush2.xpose.msra.mxu0 0.0
    %263 = vmatprep.subr.mxu0 0.0
    %264 = vmatpush2.xpose.msra.mxu0 0.0
    %265 = vmatprep.subr.mxu0 0.0
    %266 = vmatpush2.xpose.msra.mxu0 0.0
    %267 = vmatprep.mubr.f32.mxu0 0.0
    %268 = vmatmul.mubr.f32.gmra.mxu0 %v195
    %v269 = vpop.f32.mrf.mxu0
    %v270 = vadd.f32 %v188, %v269
    %v271 = vpop.f32.mrf.mxu0
    %272 = vmatprep.mubr.f32.mxu0 0.0
    %273 = vmatmul.mubr.f32.gmra.mxu0 %v197
    %v274 = vpop.f32.mrf.mxu0
    %v275 = vadd.f32 %v189, %v274
    %v276 = vpop.f32.mrf.mxu0
    %277 = vdwg.mxu0
    %278 = vrot.lane.b32.xlu0 %v177, 96
    %v279 = vpop.permute.xlu0 %278
    %280 = vrot.lane.b32.xlu0 %v179, 96
    %v281 = vpop.permute.xlu0 %280
    %v282 = vsel %vm194, %v177, 0
    %v284 = vsel %vm194, %v179, 0
    %v286 = vsel %vm194, %v279, 0
    %v288 = vsel %vm194, %v281, 0
    %290 = vmatprep.subr.mxu0 0.0
    %291 = vmatpush1.xpose.msra.mxu0 0.0
    %292 = vmatprep.subr.mxu0 0.0
    %293 = vmatpush1.xpose.msra.mxu0 0.0
    %294 = vmatprep.subr.mxu0 0.0
    %295 = vmatpush1.xpose.msra.mxu0 0.0
    %296 = vmatprep.subr.mxu0 0.0
    %297 = vmatpush1.xpose.msra.mxu0 0.0
    %298 = vmatprep.subr.mxu0 0.0
    %299 = vmatpush1.xpose.msra.mxu0 0.0
    %300 = vmatprep.subr.mxu0 0.0
    %301 = vmatpush1.xpose.msra.mxu0 0.0
    %302 = vmatprep.subr.mxu0 0.0
    %303 = vmatpush1.xpose.msra.mxu0 0.0
    %304 = vmatprep.subr.mxu0 0.0
    %305 = vmatpush1.xpose.msra.mxu0 0.0
    %306 = vmatprep.subr.mxu0 0.0
    %307 = vmatpush1.xpose.msra.mxu0 0.0
    %308 = vmatprep.subr.mxu0 0.0
    %309 = vmatpush1.xpose.msra.mxu0 0.0
    %310 = vmatprep.subr.mxu0 0.0
    %311 = vmatpush1.xpose.msra.mxu0 0.0
    %312 = vmatprep.subr.mxu0 0.0
    %313 = vmatpush1.xpose.msra.mxu0 0.0
    %314 = vmatprep.subr.mxu0 0.0
    %315 = vmatpush1.xpose.msra.mxu0 0.0
    %316 = vmatprep.subr.mxu0 0.0
    %317 = vmatpush1.xpose.msra.mxu0 0.0
    %318 = vmatprep.subr.mxu0 0.0
    %319 = vmatpush1.xpose.msra.mxu0 %v288
    %320 = vmatprep.subr.mxu0 0.0
    %321 = vmatpush1.xpose.msra.mxu0 %v286
    %322 = vmatprep.subr.mxu0 0.0
    %323 = vmatpush2.xpose.msra.mxu0 0.0
    %324 = vmatprep.subr.mxu0 0.0
    %325 = vmatpush2.xpose.msra.mxu0 0.0
    %326 = vmatprep.subr.mxu0 0.0
    %327 = vmatpush2.xpose.msra.mxu0 0.0
    %328 = vmatprep.subr.mxu0 0.0
    %329 = vmatpush2.xpose.msra.mxu0 0.0
    %330 = vmatprep.subr.mxu0 0.0
    %331 = vmatpush2.xpose.msra.mxu0 0.0
    %332 = vmatprep.subr.mxu0 0.0
    %333 = vmatpush2.xpose.msra.mxu0 0.0
    %334 = vmatprep.subr.mxu0 0.0
    %335 = vmatpush2.xpose.msra.mxu0 0.0
    %336 = vmatprep.subr.mxu0 0.0
    %337 = vmatpush2.xpose.msra.mxu0 0.0
    %338 = vmatprep.subr.mxu0 0.0
    %339 = vmatpush2.xpose.msra.mxu0 0.0
    %340 = vmatprep.subr.mxu0 0.0
    %341 = vmatpush2.xpose.msra.mxu0 0.0
    %342 = vmatprep.subr.mxu0 0.0
    %343 = vmatpush2.xpose.msra.mxu0 0.0
    %344 = vmatprep.subr.mxu0 0.0
    %345 = vmatpush2.xpose.msra.mxu0 0.0
    %346 = vmatprep.subr.mxu0 0.0
    %347 = vmatpush2.xpose.msra.mxu0 0.0
    %348 = vmatprep.subr.mxu0 0.0
    %349 = vmatpush2.xpose.msra.mxu0 0.0
    %350 = vmatprep.subr.mxu0 0.0
    %351 = vmatpush2.xpose.msra.mxu0 0.0
    %352 = vmatprep.subr.mxu0 0.0
    %353 = vmatpush2.xpose.msra.mxu0 0.0
    %354 = vmatprep.mubr.f32.mxu0 0.0
    %355 = vmatmul.mubr.f32.gmra.mxu0 %v282
    %v356 = vpop.f32.mrf.mxu0
    %v357 = vadd.f32 %v188, %v356
    %v358 = vpop.f32.mrf.mxu0
    %359 = vmatprep.mubr.f32.mxu0 0.0
    %360 = vmatmul.mubr.f32.gmra.mxu0 %v284
    %v361 = vpop.f32.mrf.mxu0
    %v362 = vadd.f32 %v189, %v361
    %v363 = vpop.f32.mrf.mxu0
    %364 = vdwg.mxu0
    %365 = vrot.lane.b32.xlu0 %v181, 96
    %v366 = vpop.permute.xlu0 %365
    %367 = vrot.lane.b32.xlu0 %v183, 96
    %v368 = vpop.permute.xlu0 %367
    %v369 = vsel %vm194, %v181, 0
    %v371 = vsel %vm194, %v183, 0
    %v373 = vsel %vm194, %v366, 0
    %v375 = vsel %vm194, %v368, 0
    %377 = vmatprep.subr.mxu0 0.0
    %378 = vmatpush1.xpose.msra.mxu0 0.0
    %379 = vmatprep.subr.mxu0 0.0
    %380 = vmatpush1.xpose.msra.mxu0 0.0
    %381 = vmatprep.subr.mxu0 0.0
    %382 = vmatpush1.xpose.msra.mxu0 0.0
    %383 = vmatprep.subr.mxu0 0.0
    %384 = vmatpush1.xpose.msra.mxu0 0.0
    %385 = vmatprep.subr.mxu0 0.0
    %386 = vmatpush1.xpose.msra.mxu0 0.0
    %387 = vmatprep.subr.mxu0 0.0
    %388 = vmatpush1.xpose.msra.mxu0 0.0
    %389 = vmatprep.subr.mxu0 0.0
    %390 = vmatpush1.xpose.msra.mxu0 0.0
    %391 = vmatprep.subr.mxu0 0.0
    %392 = vmatpush1.xpose.msra.mxu0 0.0
    %393 = vmatprep.subr.mxu0 0.0
    %394 = vmatpush1.xpose.msra.mxu0 0.0
    %395 = vmatprep.subr.mxu0 0.0
    %396 = vmatpush1.xpose.msra.mxu0 0.0
    %397 = vmatprep.subr.mxu0 0.0
    %398 = vmatpush1.xpose.msra.mxu0 0.0
    %399 = vmatprep.subr.mxu0 0.0
    %400 = vmatpush1.xpose.msra.mxu0 0.0
    %401 = vmatprep.subr.mxu0 0.0
    %402 = vmatpush1.xpose.msra.mxu0 0.0
    %403 = vmatprep.subr.mxu0 0.0
    %404 = vmatpush1.xpose.msra.mxu0 0.0
    %405 = vmatprep.subr.mxu0 0.0
    %406 = vmatpush1.xpose.msra.mxu0 %v375
    %407 = vmatprep.subr.mxu0 0.0
    %408 = vmatpush1.xpose.msra.mxu0 %v373
    %409 = vmatprep.subr.mxu0 0.0
    %410 = vmatpush2.xpose.msra.mxu0 0.0
    %411 = vmatprep.subr.mxu0 0.0
    %412 = vmatpush2.xpose.msra.mxu0 0.0
    %413 = vmatprep.subr.mxu0 0.0
    %414 = vmatpush2.xpose.msra.mxu0 0.0
    %415 = vmatprep.subr.mxu0 0.0
    %416 = vmatpush2.xpose.msra.mxu0 0.0
    %417 = vmatprep.subr.mxu0 0.0
    %418 = vmatpush2.xpose.msra.mxu0 0.0
    %419 = vmatprep.subr.mxu0 0.0
    %420 = vmatpush2.xpose.msra.mxu0 0.0
    %421 = vmatprep.subr.mxu0 0.0
    %422 = vmatpush2.xpose.msra.mxu0 0.0
    %423 = vmatprep.subr.mxu0 0.0
    %424 = vmatpush2.xpose.msra.mxu0 0.0
    %425 = vmatprep.subr.mxu0 0.0
    %426 = vmatpush2.xpose.msra.mxu0 0.0
    %427 = vmatprep.subr.mxu0 0.0
    %428 = vmatpush2.xpose.msra.mxu0 0.0
    %429 = vmatprep.subr.mxu0 0.0
    %430 = vmatpush2.xpose.msra.mxu0 0.0
    %431 = vmatprep.subr.mxu0 0.0
    %432 = vmatpush2.xpose.msra.mxu0 0.0
    %433 = vmatprep.subr.mxu0 0.0
    %434 = vmatpush2.xpose.msra.mxu0 0.0
    %435 = vmatprep.subr.mxu0 0.0
    %436 = vmatpush2.xpose.msra.mxu0 0.0
    %437 = vmatprep.subr.mxu0 0.0
    %438 = vmatpush2.xpose.msra.mxu0 0.0
    %439 = vmatprep.subr.mxu0 0.0
    %440 = vmatpush2.xpose.msra.mxu0 0.0
    %441 = vmatprep.mubr.f32.mxu0 0.0
    %442 = vmatmul.mubr.f32.gmra.mxu0 %v369
    %v443 = vpop.f32.mrf.mxu0
    %v444 = vadd.f32 %v188, %v443
    %v445 = vpop.f32.mrf.mxu0
    %446 = vmatprep.mubr.f32.mxu0 0.0
    %447 = vmatmul.mubr.f32.gmra.mxu0 %v371
    %v448 = vpop.f32.mrf.mxu0
    %v449 = vadd.f32 %v189, %v448
    %v450 = vpop.f32.mrf.mxu0
    %451 = vdwg.mxu0
    %452 = vrot.lane.b32.xlu0 %v185, 96
    %v453 = vpop.permute.xlu0 %452
    %454 = vrot.lane.b32.xlu0 %v187, 96
    %v455 = vpop.permute.xlu0 %454
    %v456 = vsel %vm194, %v185, 0
    %v458 = vsel %vm194, %v187, 0
    %v460 = vsel %vm194, %v453, 0
    %v462 = vsel %vm194, %v455, 0
    %464 = vmatprep.subr.mxu0 0.0
    %465 = vmatpush1.xpose.msra.mxu0 0.0
    %466 = vmatprep.subr.mxu0 0.0
    %467 = vmatpush1.xpose.msra.mxu0 0.0
    %468 = vmatprep.subr.mxu0 0.0
    %469 = vmatpush1.xpose.msra.mxu0 0.0
    %470 = vmatprep.subr.mxu0 0.0
    %471 = vmatpush1.xpose.msra.mxu0 0.0
    %472 = vmatprep.subr.mxu0 0.0
    %473 = vmatpush1.xpose.msra.mxu0 0.0
    %474 = vmatprep.subr.mxu0 0.0
    %475 = vmatpush1.xpose.msra.mxu0 0.0
    %476 = vmatprep.subr.mxu0 0.0
    %477 = vmatpush1.xpose.msra.mxu0 0.0
    %478 = vmatprep.subr.mxu0 0.0
    %479 = vmatpush1.xpose.msra.mxu0 0.0
    %480 = vmatprep.subr.mxu0 0.0
    %481 = vmatpush1.xpose.msra.mxu0 0.0
    %482 = vmatprep.subr.mxu0 0.0
    %483 = vmatpush1.xpose.msra.mxu0 0.0
    %484 = vmatprep.subr.mxu0 0.0
    %485 = vmatpush1.xpose.msra.mxu0 0.0
    %486 = vmatprep.subr.mxu0 0.0
    %487 = vmatpush1.xpose.msra.mxu0 0.0
    %488 = vmatprep.subr.mxu0 0.0
    %489 = vmatpush1.xpose.msra.mxu0 0.0
    %490 = vmatprep.subr.mxu0 0.0
    %491 = vmatpush1.xpose.msra.mxu0 0.0
    %492 = vmatprep.subr.mxu0 0.0
    %493 = vmatpush1.xpose.msra.mxu0 %v462
    %494 = vmatprep.subr.mxu0 0.0
    %495 = vmatpush1.xpose.msra.mxu0 %v460
    %496 = vmatprep.subr.mxu0 0.0
    %497 = vmatpush2.xpose.msra.mxu0 0.0
    %498 = vmatprep.subr.mxu0 0.0
    %499 = vmatpush2.xpose.msra.mxu0 0.0
    %500 = vmatprep.subr.mxu0 0.0
    %501 = vmatpush2.xpose.msra.mxu0 0.0
    %502 = vmatprep.subr.mxu0 0.0
    %503 = vmatpush2.xpose.msra.mxu0 0.0
    %504 = vmatprep.subr.mxu0 0.0
    %505 = vmatpush2.xpose.msra.mxu0 0.0
    %506 = vmatprep.subr.mxu0 0.0
    %507 = vmatpush2.xpose.msra.mxu0 0.0
    %508 = vmatprep.subr.mxu0 0.0
    %509 = vmatpush2.xpose.msra.mxu0 0.0
    %510 = vmatprep.subr.mxu0 0.0
    %511 = vmatpush2.xpose.msra.mxu0 0.0
    %512 = vmatprep.subr.mxu0 0.0
    %513 = vmatpush2.xpose.msra.mxu0 0.0
    %514 = vmatprep.subr.mxu0 0.0
    %515 = vmatpush2.xpose.msra.mxu0 0.0
    %516 = vmatprep.subr.mxu0 0.0
    %517 = vmatpush2.xpose.msra.mxu0 0.0
    %518 = vmatprep.subr.mxu0 0.0
    %519 = vmatpush2.xpose.msra.mxu0 0.0
    %520 = vmatprep.subr.mxu0 0.0
    %521 = vmatpush2.xpose.msra.mxu0 0.0
    %522 = vmatprep.subr.mxu0 0.0
    %523 = vmatpush2.xpose.msra.mxu0 0.0
    %524 = vmatprep.subr.mxu0 0.0
    %525 = vmatpush2.xpose.msra.mxu0 0.0
    %526 = vmatprep.subr.mxu0 0.0
    %527 = vmatpush2.xpose.msra.mxu0 0.0
    %528 = vmatprep.mubr.f32.mxu0 0.0
    %529 = vmatmul.mubr.f32.gmra.mxu0 %v456
    %v530 = vpop.f32.mrf.mxu0
    %v531 = vadd.f32 %v188, %v530
    %v532 = vpop.f32.mrf.mxu0
    %533 = vmatprep.mubr.f32.mxu0 0.0
    %534 = vmatmul.mubr.f32.gmra.mxu0 %v458
    %v535 = vpop.f32.mrf.mxu0
    %v536 = vadd.f32 %v189, %v535
    %v537 = vpop.f32.mrf.mxu0
    %538 = vdwg.mxu0
    %vm539 = vcmask 130048
    %v540 = vsel %vm539, %v270, -inf
    %541 = vmax.xlane.f32.xlu0 %v540
    %v542 = vpop.xlane.xlu0 %541
    %v543 = vsel %vm539, %v275, -inf
    %544 = vmax.xlane.f32.xlu0 %v543
    %v545 = vpop.xlane.xlu0 %544
    %v546 = vsel %vm539, %v357, -inf
    %547 = vmax.xlane.f32.xlu0 %v546
    %v548 = vpop.xlane.xlu0 %547
    %v549 = vsel %vm539, %v362, -inf
    %550 = vmax.xlane.f32.xlu0 %v549
    %v551 = vpop.xlane.xlu0 %550
    %v552 = vsel %vm539, %v444, -inf
    %553 = vmax.xlane.f32.xlu0 %v552
    %v554 = vpop.xlane.xlu0 %553
    %v555 = vsel %vm539, %v449, -inf
    %556 = vmax.xlane.f32.xlu0 %v555
    %v557 = vpop.xlane.xlu0 %556
    %v558 = vsel %vm539, %v531, -inf
    %559 = vmax.xlane.f32.xlu0 %v558
    %v560 = vpop.xlane.xlu0 %559
    %v561 = vsel %vm539, %v536, -inf
    %562 = vmax.xlane.f32.xlu0 %v561
    %v563 = vpop.xlane.xlu0 %562
    %v564 = vsub.f32 %v270, %v542
    %v565 = vsub.f32 %v275, %v545
    %v566 = vsub.f32 %v357, %v548
    %v567 = vsub.f32 %v362, %v551
    %v568 = vsub.f32 %v444, %v554
    %v569 = vsub.f32 %v449, %v557
    %v570 = vsub.f32 %v531, %v560
    %v571 = vsub.f32 %v536, %v563
    %v572 = vmul.f32 %v564, 1.442695
    %v573 = vpow.pop %v572
    %v574 = vmul.f32 %v565, 1.442695
    %v575 = vpow.pop %v574
    %v576 = vmul.f32 %v566, 1.442695
    %v577 = vpow.pop %v576
    %v578 = vmul.f32 %v567, 1.442695
    %v579 = vpow.pop %v578
    %v580 = vmul.f32 %v568, 1.442695
    %v581 = vpow.pop %v580
    %v582 = vmul.f32 %v569, 1.442695
    %v583 = vpow.pop %v582
    %v584 = vmul.f32 %v570, 1.442695
    %v585 = vpow.pop %v584
    %v586 = vmul.f32 %v571, 1.442695
    %v587 = vpow.pop %v586
    %v588 = vsel %vm539, %v573, 0.0
    %589 = vadd.xlane.f32.xlu0 %v588
    %v590 = vpop.xlane.xlu0 %589
    %v591 = vsel %vm539, %v575, 0.0
    %592 = vadd.xlane.f32.xlu0 %v591
    %v593 = vpop.xlane.xlu0 %592
    %v594 = vsel %vm539, %v577, 0.0
    %595 = vadd.xlane.f32.xlu0 %v594
    %v596 = vpop.xlane.xlu0 %595
    %v597 = vsel %vm539, %v579, 0.0
    %598 = vadd.xlane.f32.xlu0 %v597
    %v599 = vpop.xlane.xlu0 %598
    %v600 = vsel %vm539, %v581, 0.0
    %601 = vadd.xlane.f32.xlu0 %v600
    %v602 = vpop.xlane.xlu0 %601
    %v603 = vsel %vm539, %v583, 0.0
    %604 = vadd.xlane.f32.xlu0 %v603
    %v605 = vpop.xlane.xlu0 %604
    %v606 = vsel %vm539, %v585, 0.0
    %607 = vadd.xlane.f32.xlu0 %v606
    %v608 = vpop.xlane.xlu0 %607
    %v609 = vsel %vm539, %v587, 0.0
    %610 = vadd.xlane.f32.xlu0 %v609
    %v611 = vpop.xlane.xlu0 %610
    %612 = vrot.lane.b32.xlu0 %v166, 64
    %v613 = vpop.permute.xlu0 %612
    %614 = vrot.lane.b32.xlu0 %v171, 64
    %v615 = vpop.permute.xlu0 %614
    %v619 = vsel %vm539, %v573, 0
    %v622 = vsel %vm539, %v575, 0
    %624 = vmatprep.subr.mxu0 0.0
    %625 = vmatpush1.msra.mxu0 0.0
    %626 = vmatprep.subr.mxu0 0.0
    %627 = vmatpush1.msra.mxu0 0.0
    %628 = vmatprep.subr.mxu0 0.0
    %629 = vmatpush1.msra.mxu0 0.0
    %630 = vmatprep.subr.mxu0 0.0
    %631 = vmatpush1.msra.mxu0 0.0
    %632 = vmatprep.subr.mxu0 0.0
    %633 = vmatpush1.msra.mxu0 0.0
    %634 = vmatprep.subr.mxu0 0.0
    %635 = vmatpush1.msra.mxu0 0.0
    %636 = vmatprep.subr.mxu0 0.0
    %637 = vmatpush1.msra.mxu0 0.0
    %638 = vmatprep.subr.mxu0 0.0
    %639 = vmatpush1.msra.mxu0 0.0
    %640 = vmatprep.subr.mxu0 0.0
    %641 = vmatpush1.msra.mxu0 0.0
    %642 = vmatprep.subr.mxu0 0.0
    %643 = vmatpush1.msra.mxu0 0.0
    %644 = vmatprep.subr.mxu0 0.0
    %645 = vmatpush1.msra.mxu0 0.0
    %646 = vmatprep.subr.mxu0 0.0
    %647 = vmatpush1.msra.mxu0 0.0
    %648 = vmatprep.subr.mxu0 0.0
    %649 = vmatpush1.msra.mxu0 0.0
    %650 = vmatprep.subr.mxu0 0.0
    %651 = vmatpush1.msra.mxu0 0.0
    %652 = vmatprep.subr.mxu0 0.0
    %653 = vmatpush1.msra.mxu0 %v615
    %654 = vmatprep.subr.mxu0 0.0
    %655 = vmatpush1.msra.mxu0 %v613
    %656 = vmatprep.subr.mxu0 0.0
    %657 = vmatpush2.msra.mxu0 0.0
    %658 = vmatprep.subr.mxu0 0.0
    %659 = vmatpush2.msra.mxu0 0.0
    %660 = vmatprep.subr.mxu0 0.0
    %661 = vmatpush2.msra.mxu0 0.0
    %662 = vmatprep.subr.mxu0 0.0
    %663 = vmatpush2.msra.mxu0 0.0
    %664 = vmatprep.subr.mxu0 0.0
    %665 = vmatpush2.msra.mxu0 0.0
    %666 = vmatprep.subr.mxu0 0.0
    %667 = vmatpush2.msra.mxu0 0.0
    %668 = vmatprep.subr.mxu0 0.0
    %669 = vmatpush2.msra.mxu0 0.0
    %670 = vmatprep.subr.mxu0 0.0
    %671 = vmatpush2.msra.mxu0 0.0
    %672 = vmatprep.subr.mxu0 0.0
    %673 = vmatpush2.msra.mxu0 0.0
    %674 = vmatprep.subr.mxu0 0.0
    %675 = vmatpush2.msra.mxu0 0.0
    %676 = vmatprep.subr.mxu0 0.0
    %677 = vmatpush2.msra.mxu0 0.0
    %678 = vmatprep.subr.mxu0 0.0
    %679 = vmatpush2.msra.mxu0 0.0
    %680 = vmatprep.subr.mxu0 0.0
    %681 = vmatpush2.msra.mxu0 0.0
    %682 = vmatprep.subr.mxu0 0.0
    %683 = vmatpush2.msra.mxu0 0.0
    %684 = vmatprep.subr.mxu0 0.0
    %685 = vmatpush2.msra.mxu0 0.0
    %686 = vmatprep.subr.mxu0 0.0
    %687 = vmatpush2.msra.mxu0 0.0
    %688 = vmatprep.mubr.f32.mxu0 0.0
    %689 = vmatmul.mubr.f32.gmra.mxu0 %v619
    %v690 = vpop.f32.mrf.mxu0
    %v691 = vadd.f32 0.0, %v690
    %v692 = vpop.f32.mrf.mxu0
    %693 = vmatprep.mubr.f32.mxu0 0.0
    %694 = vmatmul.mubr.f32.gmra.mxu0 %v622
    %v695 = vpop.f32.mrf.mxu0
    %v696 = vadd.f32 0.0, %v695
    %v697 = vpop.f32.mrf.mxu0
    %698 = vdwg.mxu0
    %699 = vrot.lane.b32.xlu0 %v177, 64
    %v700 = vpop.permute.xlu0 %699
    %701 = vrot.lane.b32.xlu0 %v179, 64
    %v702 = vpop.permute.xlu0 %701
    %v706 = vsel %vm539, %v577, 0
    %v709 = vsel %vm539, %v579, 0
    %711 = vmatprep.subr.mxu0 0.0
    %712 = vmatpush1.msra.mxu0 0.0
    %713 = vmatprep.subr.mxu0 0.0
    %714 = vmatpush1.msra.mxu0 0.0
    %715 = vmatprep.subr.mxu0 0.0
    %716 = vmatpush1.msra.mxu0 0.0
    %717 = vmatprep.subr.mxu0 0.0
    %718 = vmatpush1.msra.mxu0 0.0
    %719 = vmatprep.subr.mxu0 0.0
    %720 = vmatpush1.msra.mxu0 0.0
    %721 = vmatprep.subr.mxu0 0.0
    %722 = vmatpush1.msra.mxu0 0.0
    %723 = vmatprep.subr.mxu0 0.0
    %724 = vmatpush1.msra.mxu0 0.0
    %725 = vmatprep.subr.mxu0 0.0
    %726 = vmatpush1.msra.mxu0 0.0
    %727 = vmatprep.subr.mxu0 0.0
    %728 = vmatpush1.msra.mxu0 0.0
    %729 = vmatprep.subr.mxu0 0.0
    %730 = vmatpush1.msra.mxu0 0.0
    %731 = vmatprep.subr.mxu0 0.0
    %732 = vmatpush1.msra.mxu0 0.0
    %733 = vmatprep.subr.mxu0 0.0
    %734 = vmatpush1.msra.mxu0 0.0
    %735 = vmatprep.subr.mxu0 0.0
    %736 = vmatpush1.msra.mxu0 0.0
    %737 = vmatprep.subr.mxu0 0.0
    %738 = vmatpush1.msra.mxu0 0.0
    %739 = vmatprep.subr.mxu0 0.0
    %740 = vmatpush1.msra.mxu0 %v702
    %741 = vmatprep.subr.mxu0 0.0
    %742 = vmatpush1.msra.mxu0 %v700
    %743 = vmatprep.subr.mxu0 0.0
    %744 = vmatpush2.msra.mxu0 0.0
    %745 = vmatprep.subr.mxu0 0.0
    %746 = vmatpush2.msra.mxu0 0.0
    %747 = vmatprep.subr.mxu0 0.0
    %748 = vmatpush2.msra.mxu0 0.0
    %749 = vmatprep.subr.mxu0 0.0
    %750 = vmatpush2.msra.mxu0 0.0
    %751 = vmatprep.subr.mxu0 0.0
    %752 = vmatpush2.msra.mxu0 0.0
    %753 = vmatprep.subr.mxu0 0.0
    %754 = vmatpush2.msra.mxu0 0.0
    %755 = vmatprep.subr.mxu0 0.0
    %756 = vmatpush2.msra.mxu0 0.0
    %757 = vmatprep.subr.mxu0 0.0
    %758 = vmatpush2.msra.mxu0 0.0
    %759 = vmatprep.subr.mxu0 0.0
    %760 = vmatpush2.msra.mxu0 0.0
    %761 = vmatprep.subr.mxu0 0.0
    %762 = vmatpush2.msra.mxu0 0.0
    %763 = vmatprep.subr.mxu0 0.0
    %764 = vmatpush2.msra.mxu0 0.0
    %765 = vmatprep.subr.mxu0 0.0
    %766 = vmatpush2.msra.mxu0 0.0
    %767 = vmatprep.subr.mxu0 0.0
    %768 = vmatpush2.msra.mxu0 0.0
    %769 = vmatprep.subr.mxu0 0.0
    %770 = vmatpush2.msra.mxu0 0.0
    %771 = vmatprep.subr.mxu0 0.0
    %772 = vmatpush2.msra.mxu0 0.0
    %773 = vmatprep.subr.mxu0 0.0
    %774 = vmatpush2.msra.mxu0 0.0
    %775 = vmatprep.mubr.f32.mxu0 0.0
    %776 = vmatmul.mubr.f32.gmra.mxu0 %v706
    %v777 = vpop.f32.mrf.mxu0
    %v778 = vadd.f32 0.0, %v777
    %v779 = vpop.f32.mrf.mxu0
    %780 = vmatprep.mubr.f32.mxu0 0.0
    %781 = vmatmul.mubr.f32.gmra.mxu0 %v709
    %v782 = vpop.f32.mrf.mxu0
    %v783 = vadd.f32 0.0, %v782
    %v784 = vpop.f32.mrf.mxu0
    %785 = vdwg.mxu0
    %786 = vrot.lane.b32.xlu0 %v181, 64
    %v787 = vpop.permute.xlu0 %786
    %788 = vrot.lane.b32.xlu0 %v183, 64
    %v789 = vpop.permute.xlu0 %788
    %v793 = vsel %vm539, %v581, 0
    %v796 = vsel %vm539, %v583, 0
    %798 = vmatprep.subr.mxu0 0.0
    %799 = vmatpush1.msra.mxu0 0.0
    %800 = vmatprep.subr.mxu0 0.0
    %801 = vmatpush1.msra.mxu0 0.0
    %802 = vmatprep.subr.mxu0 0.0
    %803 = vmatpush1.msra.mxu0 0.0
    %804 = vmatprep.subr.mxu0 0.0
    %805 = vmatpush1.msra.mxu0 0.0
    %806 = vmatprep.subr.mxu0 0.0
    %807 = vmatpush1.msra.mxu0 0.0
    %808 = vmatprep.subr.mxu0 0.0
    %809 = vmatpush1.msra.mxu0 0.0
    %810 = vmatprep.subr.mxu0 0.0
    %811 = vmatpush1.msra.mxu0 0.0
    %812 = vmatprep.subr.mxu0 0.0
    %813 = vmatpush1.msra.mxu0 0.0
    %814 = vmatprep.subr.mxu0 0.0
    %815 = vmatpush1.msra.mxu0 0.0
    %816 = vmatprep.subr.mxu0 0.0
    %817 = vmatpush1.msra.mxu0 0.0
    %818 = vmatprep.subr.mxu0 0.0
    %819 = vmatpush1.msra.mxu0 0.0
    %820 = vmatprep.subr.mxu0 0.0
    %821 = vmatpush1.msra.mxu0 0.0
    %822 = vmatprep.subr.mxu0 0.0
    %823 = vmatpush1.msra.mxu0 0.0
    %824 = vmatprep.subr.mxu0 0.0
    %825 = vmatpush1.msra.mxu0 0.0
    %826 = vmatprep.subr.mxu0 0.0
    %827 = vmatpush1.msra.mxu0 %v789
    %828 = vmatprep.subr.mxu0 0.0
    %829 = vmatpush1.msra.mxu0 %v787
    %830 = vmatprep.subr.mxu0 0.0
    %831 = vmatpush2.msra.mxu0 0.0
    %832 = vmatprep.subr.mxu0 0.0
    %833 = vmatpush2.msra.mxu0 0.0
    %834 = vmatprep.subr.mxu0 0.0
    %835 = vmatpush2.msra.mxu0 0.0
    %836 = vmatprep.subr.mxu0 0.0
    %837 = vmatpush2.msra.mxu0 0.0
    %838 = vmatprep.subr.mxu0 0.0
    %839 = vmatpush2.msra.mxu0 0.0
    %840 = vmatprep.subr.mxu0 0.0
    %841 = vmatpush2.msra.mxu0 0.0
    %842 = vmatprep.subr.mxu0 0.0
    %843 = vmatpush2.msra.mxu0 0.0
    %844 = vmatprep.subr.mxu0 0.0
    %845 = vmatpush2.msra.mxu0 0.0
    %846 = vmatprep.subr.mxu0 0.0
    %847 = vmatpush2.msra.mxu0 0.0
    %848 = vmatprep.subr.mxu0 0.0
    %849 = vmatpush2.msra.mxu0 0.0
    %850 = vmatprep.subr.mxu0 0.0
    %851 = vmatpush2.msra.mxu0 0.0
    %852 = vmatprep.subr.mxu0 0.0
    %853 = vmatpush2.msra.mxu0 0.0
    %854 = vmatprep.subr.mxu0 0.0
    %855 = vmatpush2.msra.mxu0 0.0
    %856 = vmatprep.subr.mxu0 0.0
    %857 = vmatpush2.msra.mxu0 0.0
    %858 = vmatprep.subr.mxu0 0.0
    %859 = vmatpush2.msra.mxu0 0.0
    %860 = vmatprep.subr.mxu0 0.0
    %861 = vmatpush2.msra.mxu0 0.0
    %862 = vmatprep.mubr.f32.mxu0 0.0
    %863 = vmatmul.mubr.f32.gmra.mxu0 %v793
    %v864 = vpop.f32.mrf.mxu0
    %v865 = vadd.f32 0.0, %v864
    %v866 = vpop.f32.mrf.mxu0
    %867 = vmatprep.mubr.f32.mxu0 0.0
    %868 = vmatmul.mubr.f32.gmra.mxu0 %v796
    %v869 = vpop.f32.mrf.mxu0
    %v870 = vadd.f32 0.0, %v869
    %v871 = vpop.f32.mrf.mxu0
    %872 = vdwg.mxu0
    %873 = vrot.lane.b32.xlu0 %v185, 64
    %v874 = vpop.permute.xlu0 %873
    %875 = vrot.lane.b32.xlu0 %v187, 64
    %v876 = vpop.permute.xlu0 %875
    %v880 = vsel %vm539, %v585, 0
    %v883 = vsel %vm539, %v587, 0
    %885 = vmatprep.subr.mxu0 0.0
    %886 = vmatpush1.msra.mxu0 0.0
    %887 = vmatprep.subr.mxu0 0.0
    %888 = vmatpush1.msra.mxu0 0.0
    %889 = vmatprep.subr.mxu0 0.0
    %890 = vmatpush1.msra.mxu0 0.0
    %891 = vmatprep.subr.mxu0 0.0
    %892 = vmatpush1.msra.mxu0 0.0
    %893 = vmatprep.subr.mxu0 0.0
    %894 = vmatpush1.msra.mxu0 0.0
    %895 = vmatprep.subr.mxu0 0.0
    %896 = vmatpush1.msra.mxu0 0.0
    %897 = vmatprep.subr.mxu0 0.0
    %898 = vmatpush1.msra.mxu0 0.0
    %899 = vmatprep.subr.mxu0 0.0
    %900 = vmatpush1.msra.mxu0 0.0
    %901 = vmatprep.subr.mxu0 0.0
    %902 = vmatpush1.msra.mxu0 0.0
    %903 = vmatprep.subr.mxu0 0.0
    %904 = vmatpush1.msra.mxu0 0.0
    %905 = vmatprep.subr.mxu0 0.0
    %906 = vmatpush1.msra.mxu0 0.0
    %907 = vmatprep.subr.mxu0 0.0
    %908 = vmatpush1.msra.mxu0 0.0
    %909 = vmatprep.subr.mxu0 0.0
    %910 = vmatpush1.msra.mxu0 0.0
    %911 = vmatprep.subr.mxu0 0.0
    %912 = vmatpush1.msra.mxu0 0.0
    %913 = vmatprep.subr.mxu0 0.0
    %914 = vmatpush1.msra.mxu0 %v876
    %915 = vmatprep.subr.mxu0 0.0
    %916 = vmatpush1.msra.mxu0 %v874
    %917 = vmatprep.subr.mxu0 0.0
    %918 = vmatpush2.msra.mxu0 0.0
    %919 = vmatprep.subr.mxu0 0.0
    %920 = vmatpush2.msra.mxu0 0.0
    %921 = vmatprep.subr.mxu0 0.0
    %922 = vmatpush2.msra.mxu0 0.0
    %923 = vmatprep.subr.mxu0 0.0
    %924 = vmatpush2.msra.mxu0 0.0
    %925 = vmatprep.subr.mxu0 0.0
    %926 = vmatpush2.msra.mxu0 0.0
    %927 = vmatprep.subr.mxu0 0.0
    %928 = vmatpush2.msra.mxu0 0.0
    %929 = vmatprep.subr.mxu0 0.0
    %930 = vmatpush2.msra.mxu0 0.0
    %931 = vmatprep.subr.mxu0 0.0
    %932 = vmatpush2.msra.mxu0 0.0
    %933 = vmatprep.subr.mxu0 0.0
    %934 = vmatpush2.msra.mxu0 0.0
    %935 = vmatprep.subr.mxu0 0.0
    %936 = vmatpush2.msra.mxu0 0.0
    %937 = vmatprep.subr.mxu0 0.0
    %938 = vmatpush2.msra.mxu0 0.0
    %939 = vmatprep.subr.mxu0 0.0
    %940 = vmatpush2.msra.mxu0 0.0
    %941 = vmatprep.subr.mxu0 0.0
    %942 = vmatpush2.msra.mxu0 0.0
    %943 = vmatprep.subr.mxu0 0.0
    %944 = vmatpush2.msra.mxu0 0.0
    %945 = vmatprep.subr.mxu0 0.0
    %946 = vmatpush2.msra.mxu0 0.0
    %947 = vmatprep.subr.mxu0 0.0
    %948 = vmatpush2.msra.mxu0 0.0
    %949 = vmatprep.mubr.f32.mxu0 0.0
    %950 = vmatmul.mubr.f32.gmra.mxu0 %v880
    %v951 = vpop.f32.mrf.mxu0
    %v952 = vadd.f32 0.0, %v951
    %v953 = vpop.f32.mrf.mxu0
    %954 = vmatprep.mubr.f32.mxu0 0.0
    %955 = vmatmul.mubr.f32.gmra.mxu0 %v883
    %v956 = vpop.f32.mrf.mxu0
    %v957 = vadd.f32 0.0, %v956
    %v958 = vpop.f32.mrf.mxu0
    %959 = vdwg.mxu0
    %v960 = vrcp.pop %v590
    %v961 = vmul.f32 %v691, %v960
    %v962 = vrcp.pop %v593
    %v963 = vmul.f32 %v696, %v962
    %v964 = vrcp.pop %v596
    %v965 = vmul.f32 %v778, %v964
    %v966 = vrcp.pop %v599
    %v967 = vmul.f32 %v783, %v966
    %v968 = vrcp.pop %v602
    %v969 = vmul.f32 %v865, %v968
    %v970 = vrcp.pop %v605
    %v971 = vmul.f32 %v870, %v970
    %v972 = vrcp.pop %v608
    %v973 = vmul.f32 %v952, %v972
    %v974 = vrcp.pop %v611
    %v975 = vmul.f32 %v957, %v974
    %978 = vrot.lane.b32.xlu0 %v965, 8
    %v979 = vpop.permute.xlu0 %978
    %980 = vrot.lane.b32.xlu0 %v967, 8
    %v981 = vpop.permute.xlu0 %980
    %986 = vrot.lane.b32.xlu0 %v969, 16
    %v987 = vpop.permute.xlu0 %986
    %988 = vrot.lane.b32.xlu0 %v971, 16
    %v989 = vpop.permute.xlu0 %988
    %994 = vrot.lane.b32.xlu0 %v973, 24
    %v995 = vpop.permute.xlu0 %994
    %996 = vrot.lane.b32.xlu0 %v975, 24
    %v997 = vpop.permute.xlu0 %996
    %v1000 = vsel %vm194, %v961, %v979
    %v1001 = vsel %vm194, %v963, %v981
    %v1002 = vsel %vm539, %v1000, %v987
    %v1003 = vsel %vm539, %v1001, %v989
    %vm1004 = vcmask 195584
    %v1005 = vsel %vm1004, %v1002, %v995
    %v1006 = vsel %vm1004, %v1003, %v997
    %v1007 = vld [vmem:[#allocation8] sm:$0xff]
    %v1008 = vld [vmem:[#allocation8 + $0x8] sm:$0xff]
    %v1009 = vld [vmem:[#allocation8 + $0x10] sm:$0xff]
    %v1010 = vld [vmem:[#allocation8 + $0x18] sm:$0xff]
    %v1011 = vld [vmem:[%s5] sm:$0x1]
    %v1013 = vlaneseq
    %v1014 = vshrl.u32 %v1013, 7
    %v1015 = vsub.s32 0, %v1014
    %v1016 = vrot.slane %v1011, %v1015
    %v1019 = vsel %vm92, %v1005, 0
    %v1022 = vsel %vm92, %v1006, 0
    %1024 = vmatprep.subr.mxu0 0.0
    %1025 = vmatpush1.msra.mxu0 0.0
    %1026 = vmatprep.subr.mxu0 0.0
    %1027 = vmatpush1.msra.mxu0 0.0
    %1028 = vmatprep.subr.mxu0 0.0
    %1029 = vmatpush1.msra.mxu0 0.0
    %1030 = vmatprep.subr.mxu0 0.0
    %1031 = vmatpush1.msra.mxu0 0.0
    %1032 = vmatprep.subr.mxu0 0.0
    %1033 = vmatpush1.msra.mxu0 0.0
    %1034 = vmatprep.subr.mxu0 0.0
    %1035 = vmatpush1.msra.mxu0 0.0
    %1036 = vmatprep.subr.mxu0 0.0
    %1037 = vmatpush1.msra.mxu0 0.0
    %1038 = vmatprep.subr.mxu0 0.0
    %1039 = vmatpush1.msra.mxu0 0.0
    %1040 = vmatprep.subr.mxu0 0.0
    %1041 = vmatpush1.msra.mxu0 0.0
    %1042 = vmatprep.subr.mxu0 0.0
    %1043 = vmatpush1.msra.mxu0 0.0
    %1044 = vmatprep.subr.mxu0 0.0
    %1045 = vmatpush1.msra.mxu0 0.0
    %1046 = vmatprep.subr.mxu0 0.0
    %1047 = vmatpush1.msra.mxu0 0.0
    %1048 = vmatprep.subr.mxu0 0.0
    %1049 = vmatpush1.msra.mxu0 %v1010
    %1050 = vmatprep.subr.mxu0 0.0
    %1051 = vmatpush1.msra.mxu0 %v1009
    %1052 = vmatprep.subr.mxu0 0.0
    %1053 = vmatpush1.msra.mxu0 %v1008
    %1054 = vmatprep.subr.mxu0 0.0
    %1055 = vmatpush1.msra.mxu0 %v1007
    %1056 = vmatprep.subr.mxu0 0.0
    %1057 = vmatpush2.msra.mxu0 0.0
    %1058 = vmatprep.subr.mxu0 0.0
    %1059 = vmatpush2.msra.mxu0 0.0
    %1060 = vmatprep.subr.mxu0 0.0
    %1061 = vmatpush2.msra.mxu0 0.0
    %1062 = vmatprep.subr.mxu0 0.0
    %1063 = vmatpush2.msra.mxu0 0.0
    %1064 = vmatprep.subr.mxu0 0.0
    %1065 = vmatpush2.msra.mxu0 0.0
    %1066 = vmatprep.subr.mxu0 0.0
    %1067 = vmatpush2.msra.mxu0 0.0
    %1068 = vmatprep.subr.mxu0 0.0
    %1069 = vmatpush2.msra.mxu0 0.0
    %1070 = vmatprep.subr.mxu0 0.0
    %1071 = vmatpush2.msra.mxu0 0.0
    %1072 = vmatprep.subr.mxu0 0.0
    %1073 = vmatpush2.msra.mxu0 0.0
    %1074 = vmatprep.subr.mxu0 0.0
    %1075 = vmatpush2.msra.mxu0 0.0
    %1076 = vmatprep.subr.mxu0 0.0
    %1077 = vmatpush2.msra.mxu0 0.0
    %1078 = vmatprep.subr.mxu0 0.0
    %1079 = vmatpush2.msra.mxu0 0.0
    %1080 = vmatprep.subr.mxu0 0.0
    %1081 = vmatpush2.msra.mxu0 0.0
    %1082 = vmatprep.subr.mxu0 0.0
    %1083 = vmatpush2.msra.mxu0 0.0
    %1084 = vmatprep.subr.mxu0 0.0
    %1085 = vmatpush2.msra.mxu0 0.0
    %1086 = vmatprep.subr.mxu0 0.0
    %1087 = vmatpush2.msra.mxu0 0.0
    %1088 = vmatprep.mubr.f32.mxu0 0.0
    %1089 = vmatmul.mubr.f32.gmra.mxu0 %v1019
    %v1090 = vpop.f32.mrf.mxu0
    %v1091 = vadd.f32 %v1016, %v1090
    %v1092 = vpop.f32.mrf.mxu0
    %1093 = vmatprep.mubr.f32.mxu0 0.0
    %1094 = vmatmul.mubr.f32.gmra.mxu0 %v1022
    %v1095 = vpop.f32.mrf.mxu0
    %v1096 = vadd.f32 %v1016, %v1095
    %v1097 = vpop.f32.mrf.mxu0
    %1098 = vdwg.mxu0
    %1099 = vst.msk [vmem:[#allocation10] sm:$0xff] %vm92, %v1091
    %1100 = vst.msk [vmem:[#allocation10 + $0x8] sm:$0xff] %vm92, %v1096
    // Predicated region
    $region42: #{tpu_custom_call.1} parent=1 // pred_check
      _
    $region43: #{tpu_custom_call.1} parent=1 // pred_check_branch
      %1102 = sbr.rel (0) target = $region45
    $region44: #{tpu_custom_call.1} parent=1 // pred_region
      %s1104 = ssub.s32 256, 256
      %1105 = vsyncadd [#allocation4], %s1104
      %s1106 = sshll.u32 [#allocation10], 4
      %s1107 = int_to_ptr.vmem [resolvable:$true] %s1106
      %1112 = dma.vmem_to_hbm [thread:$0]  %s1107, 256, %s6, [#allocation4], 128, 128, 8
    $region45: #{tpu_custom_call.1} parent=1 // pred_fallthru
      _
    // Predicated region
    $region46: #{tpu_custom_call.1} parent=1 // pred_check
      _
    $region47: #{tpu_custom_call.1} parent=1 // pred_check_branch
      %1114 = sbr.rel (0) target = $region49
    $region48: #{tpu_custom_call.1} parent=1 // pred_region
      %1115 = dma.done [#allocation4], 256
    $region49: #{tpu_custom_call.1} parent=1 // pred_fallthru
      _
    %1116 = vsyncpa [#allocation3], 1
    %1117 = vsyncpa [#allocation6], 1
    %1118 = vsyncpa [#allocation9], 1
    %1119 = vsyncpa [#allocation4], 1

</llo_original>
